<compile_context>
chip_gen: v7x
topology: tpu7x:2x2x1
jax: 0.10.0
libtpu: 0.0.40
codegen_flags: <defaults>
</compile_context>

<pallas_src>
import jax
import jax.numpy as jnp
import numpy as np
from jax import lax
from jax.experimental import pallas as pl
from jax.experimental.pallas import tpu as pltpu

EPS = 1e-5


def _make_kernel(*, K, H, C_in, C_out, b_tile, has_proj):
    P = K // 2
    N = b_tile * H

    def kernel(x_col_ref, emb_ref, hpos_ref, seg_ref,
               w1_ref, b1_ref, g1_ref, be1_ref,
               w2_ref, b2_ref, g2_ref, be2_ref,
               gm_ref, gmt_ref, *rest):
        if has_proj:
            wr_ref, br_ref, o_ref, ypad_ref = rest
        else:
            o_ref, ypad_ref = rest

        G = gm_ref.shape[0]
        inv_n = 1.0 / ((C_out // G) * H)

        S = seg_ref[...]          # (b_tile, N): S[b, b*H + h] = 1
        hpos = hpos_ref[...]      # (1, N) int32: position within each horizon segment

        def mish(v):
            # mish(v) = v*tanh(softplus(v)) = v*(z^2+2z)/(z^2+2z+2), z = exp(v).
            # One EUP transcendental instead of exp+log1p+tanh.
            z = jnp.exp(jnp.minimum(v, 20.0))   # ratio is exactly 1.0f beyond ~17
            w = z * (z + 2.0)
            return v * (w / (w + 2.0))

        def group_norm(y, gamma, beta):
            # Two-pass: per-(channel,batch) sums over horizon via segment matmul.
            csum = lax.dot_general(y, S, (((1,), (1,)), ((), ())),
                                   preferred_element_type=jnp.float32)        # (C_out, b_tile)
            mean_g = jnp.dot(gm_ref[...], csum,
                             preferred_element_type=jnp.float32) * inv_n      # (G, b_tile)
            mean_c = jnp.dot(gmt_ref[...], mean_g,
                             preferred_element_type=jnp.float32)              # (C_out, b_tile)
            dev = y - jnp.dot(mean_c, S, preferred_element_type=jnp.float32)  # (C_out, N)
            dsq = lax.dot_general(dev * dev, S, (((1,), (1,)), ((), ())),
                                  preferred_element_type=jnp.float32)         # (C_out, b_tile)
            var_g = jnp.dot(gm_ref[...], dsq,
                            preferred_element_type=jnp.float32) * inv_n
            var_c = jnp.dot(gmt_ref[...], var_g,
                            preferred_element_type=jnp.float32)
            inv_c = lax.rsqrt(var_c + EPS)                                    # (C_out, b_tile)
            inv_full = jnp.dot(inv_c, S, preferred_element_type=jnp.float32)  # (C_out, N)
            return dev * inv_full * gamma + beta

        # ---- block 0: conv1 as a single im2col matmul (stack built in wrapper) ----
        y = jnp.dot(w1_ref[...], x_col_ref[...],
                    preferred_element_type=jnp.float32) + b1_ref[...]
        y = mish(group_norm(y, g1_ref[...], be1_ref[...]))

        # ---- + time embedding (MLP hoisted to wrapper), broadcast over horizon ----
        emb = emb_ref[...]                                                    # (b_tile, C_out)
        y = y + lax.dot_general(emb, S, (((0,), (0,)), ((), ())),
                                preferred_element_type=jnp.float32)           # (C_out, N)

        # ---- block 1: conv2 via padded scratch + masked shifted slices ----
        # ypad's pad columns are never zero-filled; any read that could hit stale
        # pad data or cross a batch boundary inside the tile is masked out below.
        ypad_ref[:, P:P + N] = y
        acc = jnp.zeros((C_out, N), jnp.float32)
        for k in range(K):
            d = k - P
            sh = ypad_ref[:, k:k + N]                 # y shifted by d (garbage at edges)
            if d != 0:
                valid = jnp.logical_and(hpos + d >= 0, hpos + d < H)
                sh = jnp.where(valid, sh, 0.0)
            acc = acc + jnp.dot(w2_ref[k], sh, preferred_element_type=jnp.float32)
        y2 = mish(group_norm(acc + b2_ref[...], g2_ref[...], be2_ref[...]))

        # ---- residual: identity (free) or 1x1 conv ----
        xres = x_col_ref[P * C_in:(P + 1) * C_in, :]  # centre taps == original x
        if has_proj:
            res = jnp.dot(wr_ref[...], xres,
                          preferred_element_type=jnp.float32) + br_ref[...]
        else:
            res = xres
        o_ref[...] = (y2 + res).astype(o_ref.dtype)

    return kernel


def residual_temporal_block(x, t, params, *, kernel_size=5, n_groups=8, b_tile=None):
    """x: (B, C_in, H); t: (B, E); returns (B, C_out, H) float32."""
    B, C_in, H = x.shape
    K = kernel_size
    P = K // 2
    f32 = jnp.float32

    w1 = jnp.asarray(params["w1"], f32)                # (C_out, C_in, K)
    C_out = w1.shape[0]
    G = n_groups
    assert C_out % G == 0

    if b_tile is None:
        b_tile = B
    Bp = ((B + b_tile - 1) // b_tile) * b_tile
    N = b_tile * H
    if Bp // b_tile > 1:
        # lane/sublane-blocked specs need aligned blocks when not covering the array
        assert N % 128 == 0 and b_tile % 8 == 0, \
            "when splitting the batch: b_tile % 8 == 0 and b_tile*H % 128 == 0"

    x = jnp.asarray(x, f32)
    t = jnp.asarray(t, f32)
    if Bp > B:
        x = jnp.pad(x, ((0, Bp - B), (0, 0), (0, 0)))
        t = jnp.pad(t, ((0, Bp - B), (0, 0)))

    # -- conv1 im2col built once in XLA: rows are k-major (row = k*C_in + ci) --
    x_pad = jnp.pad(x, ((0, 0), (0, 0), (P, P)))
    cols = jnp.stack([x_pad[:, :, k:k + H] for k in range(K)], axis=1)   # (Bp,K,C_in,H)
    x_col = cols.transpose(1, 2, 0, 3).reshape(K * C_in, Bp * H)

    # -- time MLP hoisted: one batched XLA matmul instead of per-step matvecs --
    wt = jnp.asarray(params["wt"], f32)
    bt = jnp.asarray(params["bt"], f32)
    tm = t * jnp.tanh(jax.nn.softplus(t))
    emb = tm @ wt.T + bt                                                  # (Bp, C_out)

    # -- weights reshaped to match the k-major im2col layout --
    w1_2d = w1.transpose(0, 2, 1).reshape(C_out, K * C_in)               # [co, k*C_in+ci]
    w2 = jnp.asarray(params["w2"], f32)
    w2_k = w2.transpose(2, 0, 1)                                          # (K, C_out, C_out)

    col = lambda v: jnp.asarray(v, f32).reshape(-1, 1)
    b1, g1, be1 = col(params["b1"]), col(params["g1"]), col(params["be1"])
    b2, g2, be2 = col(params["b2"]), col(params["g2"]), col(params["be2"])

    # -- one-hot group matrices and per-tile constants --
    cpg = C_out // G
    gm = (jnp.arange(G)[:, None] == (jnp.arange(C_out)[None, :] // cpg)).astype(f32)
    gmt = gm.T
    seg = (jnp.arange(b_tile)[:, None] == (jnp.arange(N)[None, :] // H)).astype(f32)
    hpos = jnp.tile(jnp.arange(H, dtype=jnp.int32), b_tile)[None, :]

    has_proj = (C_in != C_out)
    ops = [x_col, emb, hpos, seg, w1_2d, b1, g1, be1, w2_k, b2, g2, be2, gm, gmt]
    if has_proj:
        ops += [jnp.asarray(params["wr"], f32), col(params["br"])]

    def full(a):
        nd = a.ndim
        return pl.BlockSpec(a.shape, lambda i, _nd=nd: (0,) * _nd)

    in_specs = [
        pl.BlockSpec((K * C_in, N), lambda i: (0, i)),    # x_col: lane-blocked by batch tile
        pl.BlockSpec((b_tile, C_out), lambda i: (i, 0)),  # emb:   sublane-blocked by batch tile
        full(hpos), full(seg),
        full(w1_2d), full(b1), full(g1), full(be1),
        full(w2_k), full(b2), full(g2), full(be2),
        full(gm), full(gmt),
    ]
    if has_proj:
        in_specs += [full(ops[14]), full(ops[15])]

    kernel = _make_kernel(K=K, H=H, C_in=C_in, C_out=C_out,
                          b_tile=b_tile, has_proj=has_proj)

    out2d = pl.pallas_call(
        kernel,
        out_shape=jax.ShapeDtypeStruct((C_out, Bp * H), f32),
        grid=(Bp // b_tile,),
        in_specs=in_specs,
        out_specs=pl.BlockSpec((C_out, N), lambda i: (0, i)),
        scratch_shapes=[pltpu.VMEM((C_out, N + 2 * P), f32)],
        compiler_params=pltpu.CompilerParams(dimension_semantics=("parallel",)),
    )(*ops)

    out = out2d.reshape(C_out, Bp, H).transpose(1, 0, 2)
    return out[:B]


def reference(x, t, p, K, G):
    """Pure-JAX reference matching PyTorch semantics."""
    P = K // 2

    def conv1d(xx, w, b, pad):
        y = lax.conv_general_dilated(xx, w, window_strides=(1,),
                                     padding=[(pad, pad)],
                                     dimension_numbers=("NCH", "OIH", "NCH"))
        return y + b[None, :, None]

    def gn(y, gamma, beta):
        B_, C_, H_ = y.shape
        yr = y.reshape(B_, G, C_ // G, H_)
        m = yr.mean(axis=(2, 3), keepdims=True)
        v = yr.var(axis=(2, 3), keepdims=True)
        yn = ((yr - m) / jnp.sqrt(v + EPS)).reshape(B_, C_, H_)
        return yn * gamma[None, :, None] + beta[None, :, None]

    def mish(v):
        return v * jnp.tanh(jax.nn.softplus(v))

    h = mish(gn(conv1d(x, p["w1"], p["b1"], P), p["g1"], p["be1"]))
    emb = mish(t) @ p["wt"].T + p["bt"]
    h = h + emb[:, :, None]
    h = mish(gn(conv1d(h, p["w2"], p["b2"], P), p["g2"], p["be2"]))
    if x.shape[1] != p["w1"].shape[0]:
        res = jnp.einsum("oc,bch->boh", p["wr"], x) + p["br"][None, :, None]
    else:
        res = x
    return h + res


if __name__ == "__main__":
    B, C_in, C_out, E, H, K, G = 2, 4, 16, 32, 16, 5, 8

    key = jax.random.PRNGKey(0)
    keys = jax.random.split(key, 16)

    def rnd(k, shape, scale=0.1):
        return scale * jax.random.normal(k, shape, dtype=jnp.float32)

    x = jax.random.normal(keys[0], (B, C_in, H), dtype=jnp.float32)
    t = jax.random.normal(keys[1], (B, E), dtype=jnp.float32)

    params = dict(
        w1=rnd(keys[2], (C_out, C_in, K)),  b1=rnd(keys[3], (C_out,)),
        g1=1.0 + rnd(keys[4], (C_out,)),    be1=rnd(keys[5], (C_out,)),
        w2=rnd(keys[6], (C_out, C_out, K)), b2=rnd(keys[7], (C_out,)),
        g2=1.0 + rnd(keys[8], (C_out,)),    be2=rnd(keys[9], (C_out,)),
        wt=rnd(keys[10], (C_out, E)),       bt=rnd(keys[11], (C_out,)),
        wr=rnd(keys[12], (C_out, C_in)),    br=rnd(keys[13], (C_out,)),
    )

    # --- projection-residual path (C_in != C_out) ---
    out = residual_temporal_block(x, t, params, kernel_size=K, n_groups=G)
    out = jax.block_until_ready(out)
    ref = reference(x, t, params, K, G)
    np.testing.assert_allclose(np.asarray(out), np.asarray(ref), rtol=1e-4, atol=1e-4)

    # --- identity-residual path (C_in == C_out): specialized kernel skips the 1x1 matmul ---
    x2 = jax.random.normal(keys[14], (B, C_out, H), dtype=jnp.float32)
    params2 = dict(params)
    params2["w1"] = rnd(keys[15], (C_out, C_out, K))
    out2 = residual_temporal_block(x2, t, params2, kernel_size=K, n_groups=G)
    out2 = jax.block_until_ready(out2)
    ref2 = reference(x2, t, params2, K, G)
    np.testing.assert_allclose(np.asarray(out2), np.asarray(ref2), rtol=1e-4, atol=1e-4)

    print("KERNEL_OK")
</pallas_src>

<mosaic_0001>
module attributes {stable_mosaic.version = 11 : i64} {
  func.func @kernel(%arg0: i32, %arg1: memref<20x32xf32, #tpu.memory_space<vmem>>, %arg2: memref<2x16xf32, #tpu.memory_space<vmem>>, %arg3: memref<1x32xi32, #tpu.memory_space<vmem>>, %arg4: memref<2x32xf32, #tpu.memory_space<vmem>>, %arg5: memref<16x20xf32, #tpu.memory_space<vmem>>, %arg6: memref<16x1xf32, #tpu.memory_space<vmem>>, %arg7: memref<16x1xf32, #tpu.memory_space<vmem>>, %arg8: memref<16x1xf32, #tpu.memory_space<vmem>>, %arg9: memref<5x16x16xf32, #tpu.memory_space<vmem>>, %arg10: memref<16x1xf32, #tpu.memory_space<vmem>>, %arg11: memref<16x1xf32, #tpu.memory_space<vmem>>, %arg12: memref<16x1xf32, #tpu.memory_space<vmem>>, %arg13: memref<8x16xf32, #tpu.memory_space<vmem>>, %arg14: memref<16x8xf32, #tpu.memory_space<vmem>>, %arg15: memref<16x4xf32, #tpu.memory_space<vmem>>, %arg16: memref<16x1xf32, #tpu.memory_space<vmem>>, %arg17: memref<16x32xf32, #tpu.memory_space<vmem>>, %arg18: memref<16x36xf32, #tpu.memory_space<vmem>>) attributes {dimension_semantics = [#tpu.dimension_semantics<parallel>], iteration_bounds = array<i64: 1>, scalar_prefetch = 0 : i64, scratch_operands = 1 : i64, tpu.core_type = #tpu.core_type<tc>, window_params = [{transform_indices = @transform_0, window_bounds = array<i64: 20, 32>}, {transform_indices = @transform_1, window_bounds = array<i64: 2, 16>}, {pipeline_mode = #tpu.pipeline_mode<synchronous>, transform_indices = @transform_2, window_bounds = array<i64: 1, 32>}, {pipeline_mode = #tpu.pipeline_mode<synchronous>, transform_indices = @transform_3, window_bounds = array<i64: 2, 32>}, {pipeline_mode = #tpu.pipeline_mode<synchronous>, transform_indices = @transform_4, window_bounds = array<i64: 16, 20>}, {pipeline_mode = #tpu.pipeline_mode<synchronous>, transform_indices = @transform_5, window_bounds = array<i64: 16, 1>}, {pipeline_mode = #tpu.pipeline_mode<synchronous>, transform_indices = @transform_6, window_bounds = array<i64: 16, 1>}, {pipeline_mode = #tpu.pipeline_mode<synchronous>, transform_indices = @transform_7, window_bounds = array<i64: 16, 1>}, {pipeline_mode = #tpu.pipeline_mode<synchronous>, transform_indices = @transform_8, window_bounds = array<i64: 5, 16, 16>}, {pipeline_mode = #tpu.pipeline_mode<synchronous>, transform_indices = @transform_9, window_bounds = array<i64: 16, 1>}, {pipeline_mode = #tpu.pipeline_mode<synchronous>, transform_indices = @transform_10, window_bounds = array<i64: 16, 1>}, {pipeline_mode = #tpu.pipeline_mode<synchronous>, transform_indices = @transform_11, window_bounds = array<i64: 16, 1>}, {pipeline_mode = #tpu.pipeline_mode<synchronous>, transform_indices = @transform_12, window_bounds = array<i64: 8, 16>}, {pipeline_mode = #tpu.pipeline_mode<synchronous>, transform_indices = @transform_13, window_bounds = array<i64: 16, 8>}, {pipeline_mode = #tpu.pipeline_mode<synchronous>, transform_indices = @transform_14, window_bounds = array<i64: 16, 4>}, {pipeline_mode = #tpu.pipeline_mode<synchronous>, transform_indices = @transform_15, window_bounds = array<i64: 16, 1>}, {transform_indices = @transform_16, window_bounds = array<i64: 16, 32>}]} {
    %c0 = arith.constant 0 : index
    %c0_0 = arith.constant 0 : index
    %0 = vector.load %arg4[%c0, %c0_0] : memref<2x32xf32, #tpu.memory_space<vmem>>, vector<2x32xf32>
    %c0_1 = arith.constant 0 : index
    %c0_2 = arith.constant 0 : index
    %1 = vector.load %arg3[%c0_1, %c0_2] : memref<1x32xi32, #tpu.memory_space<vmem>>, vector<1x32xi32>
    %c0_3 = arith.constant 0 : index
    %c0_4 = arith.constant 0 : index
    %2 = vector.load %arg5[%c0_3, %c0_4] : memref<16x20xf32, #tpu.memory_space<vmem>>, vector<16x20xf32>
    %c0_5 = arith.constant 0 : index
    %c0_6 = arith.constant 0 : index
    %3 = vector.load %arg1[%c0_5, %c0_6] : memref<20x32xf32, #tpu.memory_space<vmem>>, vector<20x32xf32>
    %cst = arith.constant dense<0.000000e+00> : vector<16x32xf32>
    %4 = tpu.matmul %2, %3, %cst {dimension_numbers = #tpu.dot_dimension_numbers<[1], [0], [0], [1], [0, 0, 1, 1], [], []>} : vector<16x20xf32>, vector<20x32xf32>, vector<16x32xf32> -> vector<16x32xf32>
    %c0_7 = arith.constant 0 : index
    %c0_8 = arith.constant 0 : index
    %5 = vector.load %arg6[%c0_7, %c0_8] : memref<16x1xf32, #tpu.memory_space<vmem>>, vector<16x1xf32>
    %6 = vector.broadcast %5 : vector<16x1xf32> to vector<16x32xf32>
    %7 = arith.addf %4, %6 : vector<16x32xf32>
    %c0_9 = arith.constant 0 : index
    %c0_10 = arith.constant 0 : index
    %8 = vector.load %arg7[%c0_9, %c0_10] : memref<16x1xf32, #tpu.memory_space<vmem>>, vector<16x1xf32>
    %c0_11 = arith.constant 0 : index
    %c0_12 = arith.constant 0 : index
    %9 = vector.load %arg8[%c0_11, %c0_12] : memref<16x1xf32, #tpu.memory_space<vmem>>, vector<16x1xf32>
    %cst_13 = arith.constant dense<0.000000e+00> : vector<16x2xf32>
    %10 = tpu.matmul %7, %0, %cst_13 {dimension_numbers = #tpu.dot_dimension_numbers<[1], [1], [0], [0], [0, 0, 1, 0], [], []>} : vector<16x32xf32>, vector<2x32xf32>, vector<16x2xf32> -> vector<16x2xf32>
    %c0_14 = arith.constant 0 : index
    %c0_15 = arith.constant 0 : index
    %11 = vector.load %arg13[%c0_14, %c0_15] : memref<8x16xf32, #tpu.memory_space<vmem>>, vector<8x16xf32>
    %cst_16 = arith.constant dense<0.000000e+00> : vector<8x2xf32>
    %12 = tpu.matmul %11, %10, %cst_16 {dimension_numbers = #tpu.dot_dimension_numbers<[1], [0], [0], [1], [0, 0, 1, 1], [], []>} : vector<8x16xf32>, vector<16x2xf32>, vector<8x2xf32> -> vector<8x2xf32>
    %cst_17 = arith.constant 3.125000e-02 : f32
    %13 = vector.broadcast %cst_17 : f32 to vector<8x2xf32>
    %14 = arith.mulf %12, %13 : vector<8x2xf32>
    %c0_18 = arith.constant 0 : index
    %c0_19 = arith.constant 0 : index
    %15 = vector.load %arg14[%c0_18, %c0_19] : memref<16x8xf32, #tpu.memory_space<vmem>>, vector<16x8xf32>
    %cst_20 = arith.constant dense<0.000000e+00> : vector<16x2xf32>
    %16 = tpu.matmul %15, %14, %cst_20 {dimension_numbers = #tpu.dot_dimension_numbers<[1], [0], [0], [1], [0, 0, 1, 1], [], []>} : vector<16x8xf32>, vector<8x2xf32>, vector<16x2xf32> -> vector<16x2xf32>
    %cst_21 = arith.constant dense<0.000000e+00> : vector<16x32xf32>
    %17 = tpu.matmul %16, %0, %cst_21 {dimension_numbers = #tpu.dot_dimension_numbers<[1], [0], [0], [1], [0, 0, 1, 1], [], []>} : vector<16x2xf32>, vector<2x32xf32>, vector<16x32xf32> -> vector<16x32xf32>
    %18 = arith.subf %7, %17 : vector<16x32xf32>
    %19 = arith.mulf %18, %18 : vector<16x32xf32>
    %cst_22 = arith.constant dense<0.000000e+00> : vector<16x2xf32>
    %20 = tpu.matmul %19, %0, %cst_22 {dimension_numbers = #tpu.dot_dimension_numbers<[1], [1], [0], [0], [0, 0, 1, 0], [], []>} : vector<16x32xf32>, vector<2x32xf32>, vector<16x2xf32> -> vector<16x2xf32>
    %c0_23 = arith.constant 0 : index
    %c0_24 = arith.constant 0 : index
    %21 = vector.load %arg13[%c0_23, %c0_24] : memref<8x16xf32, #tpu.memory_space<vmem>>, vector<8x16xf32>
    %cst_25 = arith.constant dense<0.000000e+00> : vector<8x2xf32>
    %22 = tpu.matmul %21, %20, %cst_25 {dimension_numbers = #tpu.dot_dimension_numbers<[1], [0], [0], [1], [0, 0, 1, 1], [], []>} : vector<8x16xf32>, vector<16x2xf32>, vector<8x2xf32> -> vector<8x2xf32>
    %cst_26 = arith.constant 3.125000e-02 : f32
    %23 = vector.broadcast %cst_26 : f32 to vector<8x2xf32>
    %24 = arith.mulf %22, %23 : vector<8x2xf32>
    %c0_27 = arith.constant 0 : index
    %c0_28 = arith.constant 0 : index
    %25 = vector.load %arg14[%c0_27, %c0_28] : memref<16x8xf32, #tpu.memory_space<vmem>>, vector<16x8xf32>
    %cst_29 = arith.constant dense<0.000000e+00> : vector<16x2xf32>
    %26 = tpu.matmul %25, %24, %cst_29 {dimension_numbers = #tpu.dot_dimension_numbers<[1], [0], [0], [1], [0, 0, 1, 1], [], []>} : vector<16x8xf32>, vector<8x2xf32>, vector<16x2xf32> -> vector<16x2xf32>
    %cst_30 = arith.constant 9.99999974E-6 : f32
    %27 = vector.broadcast %cst_30 : f32 to vector<16x2xf32>
    %28 = arith.addf %26, %27 : vector<16x2xf32>
    %29 = math.rsqrt %28 : vector<16x2xf32>
    %cst_31 = arith.constant dense<0.000000e+00> : vector<16x32xf32>
    %30 = tpu.matmul %29, %0, %cst_31 {dimension_numbers = #tpu.dot_dimension_numbers<[1], [0], [0], [1], [0, 0, 1, 1], [], []>} : vector<16x2xf32>, vector<2x32xf32>, vector<16x32xf32> -> vector<16x32xf32>
    %31 = arith.mulf %18, %30 : vector<16x32xf32>
    %32 = vector.broadcast %8 : vector<16x1xf32> to vector<16x32xf32>
    %33 = arith.mulf %31, %32 : vector<16x32xf32>
    %34 = vector.broadcast %9 : vector<16x1xf32> to vector<16x32xf32>
    %35 = arith.addf %33, %34 : vector<16x32xf32>
    %cst_32 = arith.constant 2.000000e+01 : f32
    %36 = vector.broadcast %cst_32 : f32 to vector<16x32xf32>
    %37 = arith.minimumf %35, %36 : vector<16x32xf32>
    %38 = math.exp %37 : vector<16x32xf32>
    %cst_33 = arith.constant 2.000000e+00 : f32
    %39 = vector.broadcast %cst_33 : f32 to vector<16x32xf32>
    %40 = arith.addf %38, %39 : vector<16x32xf32>
    %41 = arith.mulf %38, %40 : vector<16x32xf32>
    %cst_34 = arith.constant 2.000000e+00 : f32
    %42 = vector.broadcast %cst_34 : f32 to vector<16x32xf32>
    %43 = arith.addf %41, %42 : vector<16x32xf32>
    %44 = arith.divf %41, %43 : vector<16x32xf32>
    %45 = arith.mulf %35, %44 : vector<16x32xf32>
    %c0_35 = arith.constant 0 : index
    %c0_36 = arith.constant 0 : index
    %46 = vector.load %arg2[%c0_35, %c0_36] : memref<2x16xf32, #tpu.memory_space<vmem>>, vector<2x16xf32>
    %cst_37 = arith.constant dense<0.000000e+00> : vector<16x32xf32>
    %47 = tpu.matmul %46, %0, %cst_37 {dimension_numbers = #tpu.dot_dimension_numbers<[0], [0], [1], [1], [0, 1, 1, 1], [], []>} : vector<2x16xf32>, vector<2x32xf32>, vector<16x32xf32> -> vector<16x32xf32>
    %48 = arith.addf %45, %47 : vector<16x32xf32>
    %c0_38 = arith.constant 0 : index
    %c2 = arith.constant 2 : index
    %49 = vector.load %arg18[%c0_38, %c2] : memref<16x36xf32, #tpu.memory_space<vmem>>, vector<16x32xf32>
    tpu.vector_store %arg18[%c0_38, %c2], %48 {strides = array<i32>} : memref<16x36xf32, #tpu.memory_space<vmem>>, vector<16x32xf32>,
    %cst_39 = arith.constant 0.000000e+00 : f32
    %50 = vector.broadcast %cst_39 : f32 to vector<16x32xf32>
    %c0_40 = arith.constant 0 : index
    %c0_41 = arith.constant 0 : index
    %51 = vector.load %arg18[%c0_40, %c0_41] : memref<16x36xf32, #tpu.memory_space<vmem>>, vector<16x32xf32>
    %c-2_i32 = arith.constant -2 : i32
    %52 = vector.broadcast %c-2_i32 : i32 to vector<1x32xi32>
    %53 = arith.addi %1, %52 : vector<1x32xi32>
    %c0_i32 = arith.constant 0 : i32
    %54 = vector.broadcast %c0_i32 : i32 to vector<1x32xi32>
    %55 = arith.cmpi sge, %53, %54 : vector<1x32xi32>
    %c-2_i32_42 = arith.constant -2 : i32
    %56 = vector.broadcast %c-2_i32_42 : i32 to vector<1x32xi32>
    %57 = arith.addi %1, %56 : vector<1x32xi32>
    %c16_i32 = arith.constant 16 : i32
    %58 = vector.broadcast %c16_i32 : i32 to vector<1x32xi32>
    %59 = arith.cmpi slt, %57, %58 : vector<1x32xi32>
    %60 = arith.andi %55, %59 : vector<1x32xi1>
    %cst_43 = arith.constant 0.000000e+00 : f32
    %61 = vector.shape_cast %60 : vector<1x32xi1> to vector<1x32xi1>
    %62 = vector.broadcast %61 : vector<1x32xi1> to vector<16x32xi1>
    %63 = vector.broadcast %cst_43 : f32 to vector<16x32xf32>
    %64 = arith.select %62, %51, %63 : vector<16x32xi1>, vector<16x32xf32>
    %c0_44 = arith.constant 0 : index
    %c0_45 = arith.constant 0 : index
    %c0_46 = arith.constant 0 : index
    %65 = vector.load %arg9[%c0_44, %c0_45, %c0_46] : memref<5x16x16xf32, #tpu.memory_space<vmem>>, vector<1x16x16xf32>
    %66 = vector.shape_cast %65 : vector<1x16x16xf32> to vector<16x16xf32>
    %cst_47 = arith.constant dense<0.000000e+00> : vector<16x32xf32>
    %67 = tpu.matmul %66, %64, %cst_47 {dimension_numbers = #tpu.dot_dimension_numbers<[1], [0], [0], [1], [0, 0, 1, 1], [], []>} : vector<16x16xf32>, vector<16x32xf32>, vector<16x32xf32> -> vector<16x32xf32>
    %68 = arith.addf %50, %67 : vector<16x32xf32>
    %c0_48 = arith.constant 0 : index
    %c1 = arith.constant 1 : index
    %69 = vector.load %arg18[%c0_48, %c1] : memref<16x36xf32, #tpu.memory_space<vmem>>, vector<16x32xf32>
    %c-1_i32 = arith.constant -1 : i32
    %70 = vector.broadcast %c-1_i32 : i32 to vector<1x32xi32>
    %71 = arith.addi %1, %70 : vector<1x32xi32>
    %c0_i32_49 = arith.constant 0 : i32
    %72 = vector.broadcast %c0_i32_49 : i32 to vector<1x32xi32>
    %73 = arith.cmpi sge, %71, %72 : vector<1x32xi32>
    %c-1_i32_50 = arith.constant -1 : i32
    %74 = vector.broadcast %c-1_i32_50 : i32 to vector<1x32xi32>
    %75 = arith.addi %1, %74 : vector<1x32xi32>
    %c16_i32_51 = arith.constant 16 : i32
    %76 = vector.broadcast %c16_i32_51 : i32 to vector<1x32xi32>
    %77 = arith.cmpi slt, %75, %76 : vector<1x32xi32>
    %78 = arith.andi %73, %77 : vector<1x32xi1>
    %cst_52 = arith.constant 0.000000e+00 : f32
    %79 = vector.shape_cast %78 : vector<1x32xi1> to vector<1x32xi1>
    %80 = vector.broadcast %79 : vector<1x32xi1> to vector<16x32xi1>
    %81 = vector.broadcast %cst_52 : f32 to vector<16x32xf32>
    %82 = arith.select %80, %69, %81 : vector<16x32xi1>, vector<16x32xf32>
    %c1_53 = arith.constant 1 : index
    %c0_54 = arith.constant 0 : index
    %c0_55 = arith.constant 0 : index
    %83 = vector.load %arg9[%c1_53, %c0_54, %c0_55] : memref<5x16x16xf32, #tpu.memory_space<vmem>>, vector<1x16x16xf32>
    %84 = vector.shape_cast %83 : vector<1x16x16xf32> to vector<16x16xf32>
    %cst_56 = arith.constant dense<0.000000e+00> : vector<16x32xf32>
    %85 = tpu.matmul %84, %82, %cst_56 {dimension_numbers = #tpu.dot_dimension_numbers<[1], [0], [0], [1], [0, 0, 1, 1], [], []>} : vector<16x16xf32>, vector<16x32xf32>, vector<16x32xf32> -> vector<16x32xf32>
    %86 = arith.addf %68, %85 : vector<16x32xf32>
    %c0_57 = arith.constant 0 : index
    %c2_58 = arith.constant 2 : index
    %87 = vector.load %arg18[%c0_57, %c2_58] : memref<16x36xf32, #tpu.memory_space<vmem>>, vector<16x32xf32>
    %c2_59 = arith.constant 2 : index
    %c0_60 = arith.constant 0 : index
    %c0_61 = arith.constant 0 : index
    %88 = vector.load %arg9[%c2_59, %c0_60, %c0_61] : memref<5x16x16xf32, #tpu.memory_space<vmem>>, vector<1x16x16xf32>
    %89 = vector.shape_cast %88 : vector<1x16x16xf32> to vector<16x16xf32>
    %cst_62 = arith.constant dense<0.000000e+00> : vector<16x32xf32>
    %90 = tpu.matmul %89, %87, %cst_62 {dimension_numbers = #tpu.dot_dimension_numbers<[1], [0], [0], [1], [0, 0, 1, 1], [], []>} : vector<16x16xf32>, vector<16x32xf32>, vector<16x32xf32> -> vector<16x32xf32>
    %91 = arith.addf %86, %90 : vector<16x32xf32>
    %c0_63 = arith.constant 0 : index
    %c3 = arith.constant 3 : index
    %92 = vector.load %arg18[%c0_63, %c3] : memref<16x36xf32, #tpu.memory_space<vmem>>, vector<16x32xf32>
    %c1_i32 = arith.constant 1 : i32
    %93 = vector.broadcast %c1_i32 : i32 to vector<1x32xi32>
    %94 = arith.addi %1, %93 : vector<1x32xi32>
    %c0_i32_64 = arith.constant 0 : i32
    %95 = vector.broadcast %c0_i32_64 : i32 to vector<1x32xi32>
    %96 = arith.cmpi sge, %94, %95 : vector<1x32xi32>
    %c1_i32_65 = arith.constant 1 : i32
    %97 = vector.broadcast %c1_i32_65 : i32 to vector<1x32xi32>
    %98 = arith.addi %1, %97 : vector<1x32xi32>
    %c16_i32_66 = arith.constant 16 : i32
    %99 = vector.broadcast %c16_i32_66 : i32 to vector<1x32xi32>
    %100 = arith.cmpi slt, %98, %99 : vector<1x32xi32>
    %101 = arith.andi %96, %100 : vector<1x32xi1>
    %cst_67 = arith.constant 0.000000e+00 : f32
    %102 = vector.shape_cast %101 : vector<1x32xi1> to vector<1x32xi1>
    %103 = vector.broadcast %102 : vector<1x32xi1> to vector<16x32xi1>
    %104 = vector.broadcast %cst_67 : f32 to vector<16x32xf32>
    %105 = arith.select %103, %92, %104 : vector<16x32xi1>, vector<16x32xf32>
    %c3_68 = arith.constant 3 : index
    %c0_69 = arith.constant 0 : index
    %c0_70 = arith.constant 0 : index
    %106 = vector.load %arg9[%c3_68, %c0_69, %c0_70] : memref<5x16x16xf32, #tpu.memory_space<vmem>>, vector<1x16x16xf32>
    %107 = vector.shape_cast %106 : vector<1x16x16xf32> to vector<16x16xf32>
    %cst_71 = arith.constant dense<0.000000e+00> : vector<16x32xf32>
    %108 = tpu.matmul %107, %105, %cst_71 {dimension_numbers = #tpu.dot_dimension_numbers<[1], [0], [0], [1], [0, 0, 1, 1], [], []>} : vector<16x16xf32>, vector<16x32xf32>, vector<16x32xf32> -> vector<16x32xf32>
    %109 = arith.addf %91, %108 : vector<16x32xf32>
    %c0_72 = arith.constant 0 : index
    %c4 = arith.constant 4 : index
    %110 = vector.load %arg18[%c0_72, %c4] : memref<16x36xf32, #tpu.memory_space<vmem>>, vector<16x32xf32>
    %c2_i32 = arith.constant 2 : i32
    %111 = vector.broadcast %c2_i32 : i32 to vector<1x32xi32>
    %112 = arith.addi %1, %111 : vector<1x32xi32>
    %c0_i32_73 = arith.constant 0 : i32
    %113 = vector.broadcast %c0_i32_73 : i32 to vector<1x32xi32>
    %114 = arith.cmpi sge, %112, %113 : vector<1x32xi32>
    %c2_i32_74 = arith.constant 2 : i32
    %115 = vector.broadcast %c2_i32_74 : i32 to vector<1x32xi32>
    %116 = arith.addi %1, %115 : vector<1x32xi32>
    %c16_i32_75 = arith.constant 16 : i32
    %117 = vector.broadcast %c16_i32_75 : i32 to vector<1x32xi32>
    %118 = arith.cmpi slt, %116, %117 : vector<1x32xi32>
    %119 = arith.andi %114, %118 : vector<1x32xi1>
    %cst_76 = arith.constant 0.000000e+00 : f32
    %120 = vector.shape_cast %119 : vector<1x32xi1> to vector<1x32xi1>
    %121 = vector.broadcast %120 : vector<1x32xi1> to vector<16x32xi1>
    %122 = vector.broadcast %cst_76 : f32 to vector<16x32xf32>
    %123 = arith.select %121, %110, %122 : vector<16x32xi1>, vector<16x32xf32>
    %c4_77 = arith.constant 4 : index
    %c0_78 = arith.constant 0 : index
    %c0_79 = arith.constant 0 : index
    %124 = vector.load %arg9[%c4_77, %c0_78, %c0_79] : memref<5x16x16xf32, #tpu.memory_space<vmem>>, vector<1x16x16xf32>
    %125 = vector.shape_cast %124 : vector<1x16x16xf32> to vector<16x16xf32>
    %cst_80 = arith.constant dense<0.000000e+00> : vector<16x32xf32>
    %126 = tpu.matmul %125, %123, %cst_80 {dimension_numbers = #tpu.dot_dimension_numbers<[1], [0], [0], [1], [0, 0, 1, 1], [], []>} : vector<16x16xf32>, vector<16x32xf32>, vector<16x32xf32> -> vector<16x32xf32>
    %127 = arith.addf %109, %126 : vector<16x32xf32>
    %c0_81 = arith.constant 0 : index
    %c0_82 = arith.constant 0 : index
    %128 = vector.load %arg10[%c0_81, %c0_82] : memref<16x1xf32, #tpu.memory_space<vmem>>, vector<16x1xf32>
    %129 = vector.broadcast %128 : vector<16x1xf32> to vector<16x32xf32>
    %130 = arith.addf %127, %129 : vector<16x32xf32>
    %c0_83 = arith.constant 0 : index
    %c0_84 = arith.constant 0 : index
    %131 = vector.load %arg11[%c0_83, %c0_84] : memref<16x1xf32, #tpu.memory_space<vmem>>, vector<16x1xf32>
    %c0_85 = arith.constant 0 : index
    %c0_86 = arith.constant 0 : index
    %132 = vector.load %arg12[%c0_85, %c0_86] : memref<16x1xf32, #tpu.memory_space<vmem>>, vector<16x1xf32>
    %cst_87 = arith.constant dense<0.000000e+00> : vector<16x2xf32>
    %133 = tpu.matmul %130, %0, %cst_87 {dimension_numbers = #tpu.dot_dimension_numbers<[1], [1], [0], [0], [0, 0, 1, 0], [], []>} : vector<16x32xf32>, vector<2x32xf32>, vector<16x2xf32> -> vector<16x2xf32>
    %c0_88 = arith.constant 0 : index
    %c0_89 = arith.constant 0 : index
    %134 = vector.load %arg13[%c0_88, %c0_89] : memref<8x16xf32, #tpu.memory_space<vmem>>, vector<8x16xf32>
    %cst_90 = arith.constant dense<0.000000e+00> : vector<8x2xf32>
    %135 = tpu.matmul %134, %133, %cst_90 {dimension_numbers = #tpu.dot_dimension_numbers<[1], [0], [0], [1], [0, 0, 1, 1], [], []>} : vector<8x16xf32>, vector<16x2xf32>, vector<8x2xf32> -> vector<8x2xf32>
    %cst_91 = arith.constant 3.125000e-02 : f32
    %136 = vector.broadcast %cst_91 : f32 to vector<8x2xf32>
    %137 = arith.mulf %135, %136 : vector<8x2xf32>
    %c0_92 = arith.constant 0 : index
    %c0_93 = arith.constant 0 : index
    %138 = vector.load %arg14[%c0_92, %c0_93] : memref<16x8xf32, #tpu.memory_space<vmem>>, vector<16x8xf32>
    %cst_94 = arith.constant dense<0.000000e+00> : vector<16x2xf32>
    %139 = tpu.matmul %138, %137, %cst_94 {dimension_numbers = #tpu.dot_dimension_numbers<[1], [0], [0], [1], [0, 0, 1, 1], [], []>} : vector<16x8xf32>, vector<8x2xf32>, vector<16x2xf32> -> vector<16x2xf32>
    %cst_95 = arith.constant dense<0.000000e+00> : vector<16x32xf32>
    %140 = tpu.matmul %139, %0, %cst_95 {dimension_numbers = #tpu.dot_dimension_numbers<[1], [0], [0], [1], [0, 0, 1, 1], [], []>} : vector<16x2xf32>, vector<2x32xf32>, vector<16x32xf32> -> vector<16x32xf32>
    %141 = arith.subf %130, %140 : vector<16x32xf32>
    %142 = arith.mulf %141, %141 : vector<16x32xf32>
    %cst_96 = arith.constant dense<0.000000e+00> : vector<16x2xf32>
    %143 = tpu.matmul %142, %0, %cst_96 {dimension_numbers = #tpu.dot_dimension_numbers<[1], [1], [0], [0], [0, 0, 1, 0], [], []>} : vector<16x32xf32>, vector<2x32xf32>, vector<16x2xf32> -> vector<16x2xf32>
    %c0_97 = arith.constant 0 : index
    %c0_98 = arith.constant 0 : index
    %144 = vector.load %arg13[%c0_97, %c0_98] : memref<8x16xf32, #tpu.memory_space<vmem>>, vector<8x16xf32>
    %cst_99 = arith.constant dense<0.000000e+00> : vector<8x2xf32>
    %145 = tpu.matmul %144, %143, %cst_99 {dimension_numbers = #tpu.dot_dimension_numbers<[1], [0], [0], [1], [0, 0, 1, 1], [], []>} : vector<8x16xf32>, vector<16x2xf32>, vector<8x2xf32> -> vector<8x2xf32>
    %cst_100 = arith.constant 3.125000e-02 : f32
    %146 = vector.broadcast %cst_100 : f32 to vector<8x2xf32>
    %147 = arith.mulf %145, %146 : vector<8x2xf32>
    %c0_101 = arith.constant 0 : index
    %c0_102 = arith.constant 0 : index
    %148 = vector.load %arg14[%c0_101, %c0_102] : memref<16x8xf32, #tpu.memory_space<vmem>>, vector<16x8xf32>
    %cst_103 = arith.constant dense<0.000000e+00> : vector<16x2xf32>
    %149 = tpu.matmul %148, %147, %cst_103 {dimension_numbers = #tpu.dot_dimension_numbers<[1], [0], [0], [1], [0, 0, 1, 1], [], []>} : vector<16x8xf32>, vector<8x2xf32>, vector<16x2xf32> -> vector<16x2xf32>
    %cst_104 = arith.constant 9.99999974E-6 : f32
    %150 = vector.broadcast %cst_104 : f32 to vector<16x2xf32>
    %151 = arith.addf %149, %150 : vector<16x2xf32>
    %152 = math.rsqrt %151 : vector<16x2xf32>
    %cst_105 = arith.constant dense<0.000000e+00> : vector<16x32xf32>
    %153 = tpu.matmul %152, %0, %cst_105 {dimension_numbers = #tpu.dot_dimension_numbers<[1], [0], [0], [1], [0, 0, 1, 1], [], []>} : vector<16x2xf32>, vector<2x32xf32>, vector<16x32xf32> -> vector<16x32xf32>
    %154 = arith.mulf %141, %153 : vector<16x32xf32>
    %155 = vector.broadcast %131 : vector<16x1xf32> to vector<16x32xf32>
    %156 = arith.mulf %154, %155 : vector<16x32xf32>
    %157 = vector.broadcast %132 : vector<16x1xf32> to vector<16x32xf32>
    %158 = arith.addf %156, %157 : vector<16x32xf32>
    %cst_106 = arith.constant 2.000000e+01 : f32
    %159 = vector.broadcast %cst_106 : f32 to vector<16x32xf32>
    %160 = arith.minimumf %158, %159 : vector<16x32xf32>
    %161 = math.exp %160 : vector<16x32xf32>
    %cst_107 = arith.constant 2.000000e+00 : f32
    %162 = vector.broadcast %cst_107 : f32 to vector<16x32xf32>
    %163 = arith.addf %161, %162 : vector<16x32xf32>
    %164 = arith.mulf %161, %163 : vector<16x32xf32>
    %cst_108 = arith.constant 2.000000e+00 : f32
    %165 = vector.broadcast %cst_108 : f32 to vector<16x32xf32>
    %166 = arith.addf %164, %165 : vector<16x32xf32>
    %167 = arith.divf %164, %166 : vector<16x32xf32>
    %168 = arith.mulf %158, %167 : vector<16x32xf32>
    %c8 = arith.constant 8 : index
    %c0_109 = arith.constant 0 : index
    %169 = vector.load %arg1[%c8, %c0_109] : memref<20x32xf32, #tpu.memory_space<vmem>>, vector<4x32xf32>
    %c0_110 = arith.constant 0 : index
    %c0_111 = arith.constant 0 : index
    %170 = vector.load %arg15[%c0_110, %c0_111] : memref<16x4xf32, #tpu.memory_space<vmem>>, vector<16x4xf32>
    %cst_112 = arith.constant dense<0.000000e+00> : vector<16x32xf32>
    %171 = tpu.matmul %170, %169, %cst_112 {dimension_numbers = #tpu.dot_dimension_numbers<[1], [0], [0], [1], [0, 0, 1, 1], [], []>} : vector<16x4xf32>, vector<4x32xf32>, vector<16x32xf32> -> vector<16x32xf32>
    %c0_113 = arith.constant 0 : index
    %c0_114 = arith.constant 0 : index
    %172 = vector.load %arg16[%c0_113, %c0_114] : memref<16x1xf32, #tpu.memory_space<vmem>>, vector<16x1xf32>
    %173 = vector.broadcast %172 : vector<16x1xf32> to vector<16x32xf32>
    %174 = arith.addf %171, %173 : vector<16x32xf32>
    %175 = arith.addf %168, %174 : vector<16x32xf32>
    %c0_115 = arith.constant 0 : index
    %c0_116 = arith.constant 0 : index
    %176 = vector.load %arg17[%c0_115, %c0_116] : memref<16x32xf32, #tpu.memory_space<vmem>>, vector<16x32xf32>
    tpu.vector_store %arg17[%c0_115, %c0_116], %175 {strides = array<i32>} : memref<16x32xf32, #tpu.memory_space<vmem>>, vector<16x32xf32>,
    return
  }
  func.func @transform_0(%arg0: i32) -> (i32, i32) {
    %c0_i32 = arith.constant 0 : i32
    %c0_i32_0 = arith.constant 0 : i32
    return %c0_i32, %arg0 : i32, i32
  }
  func.func @transform_1(%arg0: i32) -> (i32, i32) {
    %c0_i32 = arith.constant 0 : i32
    %c0_i32_0 = arith.constant 0 : i32
    return %arg0, %c0_i32 : i32, i32
  }
  func.func @transform_2(%arg0: i32) -> (i32, i32) {
    %c0_i32 = arith.constant 0 : i32
    %c0_i32_0 = arith.constant 0 : i32
    %c0_i32_1 = arith.constant 0 : i32
    return %c0_i32, %c0_i32_0 : i32, i32
  }
  func.func @transform_3(%arg0: i32) -> (i32, i32) {
    %c0_i32 = arith.constant 0 : i32
    %c0_i32_0 = arith.constant 0 : i32
    %c0_i32_1 = arith.constant 0 : i32
    return %c0_i32, %c0_i32_0 : i32, i32
  }
  func.func @transform_4(%arg0: i32) -> (i32, i32) {
    %c0_i32 = arith.constant 0 : i32
    %c0_i32_0 = arith.constant 0 : i32
    %c0_i32_1 = arith.constant 0 : i32
    return %c0_i32, %c0_i32_0 : i32, i32
  }
  func.func @transform_5(%arg0: i32) -> (i32, i32) {
    %c0_i32 = arith.constant 0 : i32
    %c0_i32_0 = arith.constant 0 : i32
    %c0_i32_1 = arith.constant 0 : i32
    return %c0_i32, %c0_i32_0 : i32, i32
  }
  func.func @transform_6(%arg0: i32) -> (i32, i32) {
    %c0_i32 = arith.constant 0 : i32
    %c0_i32_0 = arith.constant 0 : i32
    %c0_i32_1 = arith.constant 0 : i32
    return %c0_i32, %c0_i32_0 : i32, i32
  }
  func.func @transform_7(%arg0: i32) -> (i32, i32) {
    %c0_i32 = arith.constant 0 : i32
    %c0_i32_0 = arith.constant 0 : i32
    %c0_i32_1 = arith.constant 0 : i32
    return %c0_i32, %c0_i32_0 : i32, i32
  }
  func.func @transform_8(%arg0: i32) -> (i32, i32, i32) {
    %c0_i32 = arith.constant 0 : i32
    %c0_i32_0 = arith.constant 0 : i32
    %c0_i32_1 = arith.constant 0 : i32
    %c0_i32_2 = arith.constant 0 : i32
    return %c0_i32, %c0_i32_0, %c0_i32_1 : i32, i32, i32
  }
  func.func @transform_9(%arg0: i32) -> (i32, i32) {
    %c0_i32 = arith.constant 0 : i32
    %c0_i32_0 = arith.constant 0 : i32
    %c0_i32_1 = arith.constant 0 : i32
    return %c0_i32, %c0_i32_0 : i32, i32
  }
  func.func @transform_10(%arg0: i32) -> (i32, i32) {
    %c0_i32 = arith.constant 0 : i32
    %c0_i32_0 = arith.constant 0 : i32
    %c0_i32_1 = arith.constant 0 : i32
    return %c0_i32, %c0_i32_0 : i32, i32
  }
  func.func @transform_11(%arg0: i32) -> (i32, i32) {
    %c0_i32 = arith.constant 0 : i32
    %c0_i32_0 = arith.constant 0 : i32
    %c0_i32_1 = arith.constant 0 : i32
    return %c0_i32, %c0_i32_0 : i32, i32
  }
  func.func @transform_12(%arg0: i32) -> (i32, i32) {
    %c0_i32 = arith.constant 0 : i32
    %c0_i32_0 = arith.constant 0 : i32
    %c0_i32_1 = arith.constant 0 : i32
    return %c0_i32, %c0_i32_0 : i32, i32
  }
  func.func @transform_13(%arg0: i32) -> (i32, i32) {
    %c0_i32 = arith.constant 0 : i32
    %c0_i32_0 = arith.constant 0 : i32
    %c0_i32_1 = arith.constant 0 : i32
    return %c0_i32, %c0_i32_0 : i32, i32
  }
  func.func @transform_14(%arg0: i32) -> (i32, i32) {
    %c0_i32 = arith.constant 0 : i32
    %c0_i32_0 = arith.constant 0 : i32
    %c0_i32_1 = arith.constant 0 : i32
    return %c0_i32, %c0_i32_0 : i32, i32
  }
  func.func @transform_15(%arg0: i32) -> (i32, i32) {
    %c0_i32 = arith.constant 0 : i32
    %c0_i32_0 = arith.constant 0 : i32
    %c0_i32_1 = arith.constant 0 : i32
    return %c0_i32, %c0_i32_0 : i32, i32
  }
  func.func @transform_16(%arg0: i32) -> (i32, i32) {
    %c0_i32 = arith.constant 0 : i32
    %c0_i32_0 = arith.constant 0 : i32
    return %c0_i32, %arg0 : i32, i32
  }
}

</mosaic_0001>

<llo_original>
// kernel: tpu_custom_call.1
$region0: #{tpu_custom_call.1}
  #allocation0 [shape = 'u32[]', space=smem, size = 0x4, offset = 0x4, fixed_abs, tag = 'smem constant byte address 0x4 - core index']
  #allocation1 [shape = 'u32[144,128]{1,0:T(1,128)}', space=vmem, size = 0x12000, scoped, tag = 'internal scratch']
  #allocation2 [shape = 'f32[16,36]{1,0:T(8,128)}', space=vmem, size = 0x2000, scoped, tag = 'scratch operand']
  %s0 = inlined_call_operand.vmem [shape: f32[20,32], index: 0, kind: input, shape index: {}]
  %s1 = inlined_call_operand.vmem [shape: f32[2,16], index: 1, kind: input, shape index: {}]
  %s2 = inlined_call_operand.vmem [shape: s32[1,32], index: 2, kind: input, shape index: {}]
  %s3 = inlined_call_operand.vmem [shape: f32[2,32], index: 3, kind: input, shape index: {}]
  %s4 = inlined_call_operand.vmem [shape: f32[16,20], index: 4, kind: input, shape index: {}]
  %s5 = inlined_call_operand.vmem [shape: f32[16,1], index: 5, kind: input, shape index: {}]
  %s6 = inlined_call_operand.vmem [shape: f32[16,1], index: 6, kind: input, shape index: {}]
  %s7 = inlined_call_operand.vmem [shape: f32[16,1], index: 7, kind: input, shape index: {}]
  %s8 = inlined_call_operand.vmem [shape: f32[5,16,16], index: 8, kind: input, shape index: {}]
  %s9 = inlined_call_operand.vmem [shape: f32[16,1], index: 9, kind: input, shape index: {}]
  %s10 = inlined_call_operand.vmem [shape: f32[16,1], index: 10, kind: input, shape index: {}]
  %s11 = inlined_call_operand.vmem [shape: f32[16,1], index: 11, kind: input, shape index: {}]
  %s12 = inlined_call_operand.vmem [shape: f32[8,16], index: 12, kind: input, shape index: {}]
  %s13 = inlined_call_operand.vmem [shape: f32[16,8], index: 13, kind: input, shape index: {}]
  %s14 = inlined_call_operand.vmem [shape: f32[16,4], index: 14, kind: input, shape index: {}]
  %s15 = inlined_call_operand.vmem [shape: f32[16,1], index: 15, kind: input, shape index: {}]
  %s16 = inlined_call_operand.hbm [shape: f32[16,32], index: 16, kind: output, shape index: {}]
  %s17 = sld [smem:[#allocation0]]
  $region74: #{tpu_custom_call.1} parent=0
    _
  %s19 = ssub.s32 1, %s17
  %s20 = scalar_select 0, %s19, %s17
  $region1: #{tpu_custom_call.1} parent=0
    #allocation3 [shape = 'u8[8192]{0}', space=vmem, size = 0x2000, scoped, tag = 'output window, operand 0, single buffered']
    #allocation4 [shape = 's32[1]{0}', space=sflag, size = 0x4, scoped, tag = 'scoped memory for tpu_custom_call.1']
    %21 = vsyncpa [#allocation4], 0
    // Predicated region
    $region2: #{tpu_custom_call.1} parent=1 // pred_check
      _
    $region3: #{tpu_custom_call.1} parent=1 // pred_check_branch
      %23 = sbr.rel (0) target = $region5
    $region4: #{tpu_custom_call.1} parent=1 // pred_region
      _
    $region5: #{tpu_custom_call.1} parent=1 // pred_fallthru
      _
    // Predicated region
    $region6: #{tpu_custom_call.1} parent=1 // pred_check
      _
    $region7: #{tpu_custom_call.1} parent=1 // pred_check_branch
      %25 = sbr.rel (0) target = $region9
    $region8: #{tpu_custom_call.1} parent=1 // pred_region
      _
    $region9: #{tpu_custom_call.1} parent=1 // pred_fallthru
      _
    // Predicated region
    $region10: #{tpu_custom_call.1} parent=1 // pred_check
      _
    $region11: #{tpu_custom_call.1} parent=1 // pred_check_branch
      %27 = sbr.rel (0) target = $region13
    $region12: #{tpu_custom_call.1} parent=1 // pred_region
      _
    $region13: #{tpu_custom_call.1} parent=1 // pred_fallthru
      _
    // Predicated region
    $region14: #{tpu_custom_call.1} parent=1 // pred_check
      _
    $region15: #{tpu_custom_call.1} parent=1 // pred_check_branch
      %29 = sbr.rel (0) target = $region17
    $region16: #{tpu_custom_call.1} parent=1 // pred_region
      _
    $region17: #{tpu_custom_call.1} parent=1 // pred_fallthru
      _
    // Predicated region
    $region18: #{tpu_custom_call.1} parent=1 // pred_check
      _
    $region19: #{tpu_custom_call.1} parent=1 // pred_check_branch
      %31 = sbr.rel (0) target = $region21
    $region20: #{tpu_custom_call.1} parent=1 // pred_region
      _
    $region21: #{tpu_custom_call.1} parent=1 // pred_fallthru
      _
    // Predicated region
    $region22: #{tpu_custom_call.1} parent=1 // pred_check
      _
    $region23: #{tpu_custom_call.1} parent=1 // pred_check_branch
      %33 = sbr.rel (0) target = $region25
    $region24: #{tpu_custom_call.1} parent=1 // pred_region
      _
    $region25: #{tpu_custom_call.1} parent=1 // pred_fallthru
      _
    // Predicated region
    $region26: #{tpu_custom_call.1} parent=1 // pred_check
      _
    $region27: #{tpu_custom_call.1} parent=1 // pred_check_branch
      %35 = sbr.rel (0) target = $region29
    $region28: #{tpu_custom_call.1} parent=1 // pred_region
      _
    $region29: #{tpu_custom_call.1} parent=1 // pred_fallthru
      _
    // Predicated region
    $region30: #{tpu_custom_call.1} parent=1 // pred_check
      _
    $region31: #{tpu_custom_call.1} parent=1 // pred_check_branch
      %37 = sbr.rel (0) target = $region33
    $region32: #{tpu_custom_call.1} parent=1 // pred_region
      _
    $region33: #{tpu_custom_call.1} parent=1 // pred_fallthru
      _
    // Predicated region
    $region34: #{tpu_custom_call.1} parent=1 // pred_check
      _
    $region35: #{tpu_custom_call.1} parent=1 // pred_check_branch
      %39 = sbr.rel (0) target = $region37
    $region36: #{tpu_custom_call.1} parent=1 // pred_region
      _
    $region37: #{tpu_custom_call.1} parent=1 // pred_fallthru
      _
    // Predicated region
    $region38: #{tpu_custom_call.1} parent=1 // pred_check
      _
    $region39: #{tpu_custom_call.1} parent=1 // pred_check_branch
      %41 = sbr.rel (0) target = $region41
    $region40: #{tpu_custom_call.1} parent=1 // pred_region
      _
    $region41: #{tpu_custom_call.1} parent=1 // pred_fallthru
      _
    // Predicated region
    $region42: #{tpu_custom_call.1} parent=1 // pred_check
      _
    $region43: #{tpu_custom_call.1} parent=1 // pred_check_branch
      %43 = sbr.rel (0) target = $region45
    $region44: #{tpu_custom_call.1} parent=1 // pred_region
      _
    $region45: #{tpu_custom_call.1} parent=1 // pred_fallthru
      _
    // Predicated region
    $region46: #{tpu_custom_call.1} parent=1 // pred_check
      _
    $region47: #{tpu_custom_call.1} parent=1 // pred_check_branch
      %45 = sbr.rel (0) target = $region49
    $region48: #{tpu_custom_call.1} parent=1 // pred_region
      _
    $region49: #{tpu_custom_call.1} parent=1 // pred_fallthru
      _
    // Predicated region
    $region50: #{tpu_custom_call.1} parent=1 // pred_check
      _
    $region51: #{tpu_custom_call.1} parent=1 // pred_check_branch
      %47 = sbr.rel (0) target = $region53
    $region52: #{tpu_custom_call.1} parent=1 // pred_region
      _
    $region53: #{tpu_custom_call.1} parent=1 // pred_fallthru
      _
    // Predicated region
    $region54: #{tpu_custom_call.1} parent=1 // pred_check
      _
    $region55: #{tpu_custom_call.1} parent=1 // pred_check_branch
      %49 = sbr.rel (0) target = $region57
    $region56: #{tpu_custom_call.1} parent=1 // pred_region
      _
    $region57: #{tpu_custom_call.1} parent=1 // pred_fallthru
      _
    // Predicated region
    $region58: #{tpu_custom_call.1} parent=1 // pred_check
      _
    $region59: #{tpu_custom_call.1} parent=1 // pred_check_branch
      %51 = sbr.rel (0) target = $region61
    $region60: #{tpu_custom_call.1} parent=1 // pred_region
      _
    $region61: #{tpu_custom_call.1} parent=1 // pred_fallthru
      _
    // Predicated region
    $region62: #{tpu_custom_call.1} parent=1 // pred_check
      _
    $region63: #{tpu_custom_call.1} parent=1 // pred_check_branch
      %53 = sbr.rel (0) target = $region65
    $region64: #{tpu_custom_call.1} parent=1 // pred_region
      _
    $region65: #{tpu_custom_call.1} parent=1 // pred_fallthru
      _
    %v54 = vld [vmem:[%s3] sm:$0x3]
    %v55 = vld [vmem:[%s2] sm:$0x1]
    %v56 = vld [vmem:[%s4] sm:$0xff]
    %v57 = vld [vmem:[%s4 + $0x8] sm:$0xff]
    %v58 = vld [vmem:[%s0] sm:$0xff]
    %v59 = vld [vmem:[%s0 + $0x8] sm:$0xff]
    %v60 = vld [vmem:[%s0 + $0x10] sm:$0xf]
    %v61 = vld [vmem:[%s5] sm:$0xff]
    %v62 = vld [vmem:[%s5 + $0x8] sm:$0xff]
    %64 = vset.pattern.permute.xlu0 0
    %65 = vperm.xlu0 %64, %v61
    %v66 = vpop.permute.xlu0 %65
    %69 = vset.pattern.permute.xlu0 0
    %70 = vperm.xlu0 %69, %v62
    %v71 = vpop.permute.xlu0 %70
    %vm73 = vcmask 162816
    %v75 = vsel %vm73, %v56, 0
    %v78 = vsel %vm73, %v57, 0
    %vm80 = vcmask 1043456
    %v82 = vsel %vm80, %v60, 0
    %84 = vmatprep.subr.mxu0 0.0
    %85 = vmatpush1.msra.mxu0 %v58
    %86 = vmatprep.subr.mxu0 0.0
    %87 = vmatpush1.msra.mxu0 %v59
    %88 = vmatprep.subr.mxu0 0.0
    %89 = vmatpush1.msra.mxu0 %v82
    %90 = vmatprep.subr.mxu0 0.0
    %91 = vmatpush1.msra.mxu0 0.0
    %92 = vmatprep.subr.mxu0 0.0
    %93 = vmatpush1.msra.mxu0 0.0
    %94 = vmatprep.subr.mxu0 0.0
    %95 = vmatpush1.msra.mxu0 0.0
    %96 = vmatprep.subr.mxu0 0.0
    %97 = vmatpush1.msra.mxu0 0.0
    %98 = vmatprep.subr.mxu0 0.0
    %99 = vmatpush1.msra.mxu0 0.0
    %100 = vmatprep.subr.mxu0 0.0
    %101 = vmatpush1.msra.mxu0 0.0
    %102 = vmatprep.subr.mxu0 0.0
    %103 = vmatpush1.msra.mxu0 0.0
    %104 = vmatprep.subr.mxu0 0.0
    %105 = vmatpush1.msra.mxu0 0.0
    %106 = vmatprep.subr.mxu0 0.0
    %107 = vmatpush1.msra.mxu0 0.0
    %108 = vmatprep.subr.mxu0 0.0
    %109 = vmatpush1.msra.mxu0 0.0
    %110 = vmatprep.subr.mxu0 0.0
    %111 = vmatpush1.msra.mxu0 0.0
    %112 = vmatprep.subr.mxu0 0.0
    %113 = vmatpush1.msra.mxu0 0.0
    %114 = vmatprep.subr.mxu0 0.0
    %115 = vmatpush1.msra.mxu0 0.0
    %116 = vmatprep.subr.mxu0 0.0
    %117 = vmatpush1.msra.mxu0 0.0
    %118 = vmatprep.subr.mxu0 0.0
    %119 = vmatpush1.msra.mxu0 0.0
    %120 = vmatprep.subr.mxu0 0.0
    %121 = vmatpush1.msra.mxu0 0.0
    %122 = vmatprep.subr.mxu0 0.0
    %123 = vmatpush1.msra.mxu0 0.0
    %124 = vmatprep.subr.mxu0 0.0
    %125 = vmatpush1.msra.mxu0 0.0
    %126 = vmatprep.subr.mxu0 0.0
    %127 = vmatpush1.msra.mxu0 0.0
    %128 = vmatprep.subr.mxu0 0.0
    %129 = vmatpush1.msra.mxu0 0.0
    %130 = vmatprep.subr.mxu0 0.0
    %131 = vmatpush1.msra.mxu0 0.0
    %132 = vmatprep.subr.mxu0 0.0
    %133 = vmatpush1.msra.mxu0 0.0
    %134 = vmatprep.subr.mxu0 0.0
    %135 = vmatpush1.msra.mxu0 0.0
    %136 = vmatprep.subr.mxu0 0.0
    %137 = vmatpush1.msra.mxu0 0.0
    %138 = vmatprep.subr.mxu0 0.0
    %139 = vmatpush1.msra.mxu0 0.0
    %140 = vmatprep.subr.mxu0 0.0
    %141 = vmatpush1.msra.mxu0 0.0
    %142 = vmatprep.subr.mxu0 0.0
    %143 = vmatpush1.msra.mxu0 0.0
    %144 = vmatprep.subr.mxu0 0.0
    %145 = vmatpush1.msra.mxu0 0.0
    %146 = vmatprep.subr.mxu0 0.0
    %147 = vmatpush1.msra.mxu0 0.0
    %148 = vmatprep.mubr.f32.mxu0 0.0
    %149 = vmatmul.mubr.f32.gmra.mrb[0].mxu0 %v75
    %v150 = vpop.f32.mrb[0].mxu0
    %v151 = vadd.f32 %v66, %v150
    %v152 = vpop.f32.mrb[0].mxu0
    %153 = vmatprep.mubr.f32.mxu0 0.0
    %154 = vmatmul.mubr.f32.gmra.mrb[0].mxu0 %v78
    %v155 = vpop.f32.mrb[0].mxu0
    %v156 = vadd.f32 %v71, %v155
    %v157 = vpop.f32.mrb[0].mxu0
    %158 = vdwg.mxu0
    %v159 = vld [vmem:[%s6] sm:$0xff]
    %v160 = vld [vmem:[%s6 + $0x8] sm:$0xff]
    %v161 = vld [vmem:[%s7] sm:$0xff]
    %v162 = vld [vmem:[%s7 + $0x8] sm:$0xff]
    %vm163 = vcmask 261120
    %v165 = vsel %vm163, %v151, 0
    %v168 = vsel %vm163, %v156, 0
    %v171 = vsel %vm163, %v54, 0
    %173 = vmatprep.subr.mxu0 0.0
    %174 = vmatpush1.xpose.msra.mxu0 %v171
    %175 = vmatprep.subr.mxu0 0.0
    %176 = vmatpush1.xpose.msra.mxu0 0.0
    %177 = vmatprep.subr.mxu0 0.0
    %178 = vmatpush1.xpose.msra.mxu0 0.0
    %179 = vmatprep.subr.mxu0 0.0
    %180 = vmatpush1.xpose.msra.mxu0 0.0
    %181 = vmatprep.subr.mxu0 0.0
    %182 = vmatpush1.xpose.msra.mxu0 0.0
    %183 = vmatprep.subr.mxu0 0.0
    %184 = vmatpush1.xpose.msra.mxu0 0.0
    %185 = vmatprep.subr.mxu0 0.0
    %186 = vmatpush1.xpose.msra.mxu0 0.0
    %187 = vmatprep.subr.mxu0 0.0
    %188 = vmatpush1.xpose.msra.mxu0 0.0
    %189 = vmatprep.subr.mxu0 0.0
    %190 = vmatpush1.xpose.msra.mxu0 0.0
    %191 = vmatprep.subr.mxu0 0.0
    %192 = vmatpush1.xpose.msra.mxu0 0.0
    %193 = vmatprep.subr.mxu0 0.0
    %194 = vmatpush1.xpose.msra.mxu0 0.0
    %195 = vmatprep.subr.mxu0 0.0
    %196 = vmatpush1.xpose.msra.mxu0 0.0
    %197 = vmatprep.subr.mxu0 0.0
    %198 = vmatpush1.xpose.msra.mxu0 0.0
    %199 = vmatprep.subr.mxu0 0.0
    %200 = vmatpush1.xpose.msra.mxu0 0.0
    %201 = vmatprep.subr.mxu0 0.0
    %202 = vmatpush1.xpose.msra.mxu0 0.0
    %203 = vmatprep.subr.mxu0 0.0
    %204 = vmatpush1.xpose.msra.mxu0 0.0
    %205 = vmatprep.subr.mxu0 0.0
    %206 = vmatpush1.xpose.msra.mxu0 0.0
    %207 = vmatprep.subr.mxu0 0.0
    %208 = vmatpush1.xpose.msra.mxu0 0.0
    %209 = vmatprep.subr.mxu0 0.0
    %210 = vmatpush1.xpose.msra.mxu0 0.0
    %211 = vmatprep.subr.mxu0 0.0
    %212 = vmatpush1.xpose.msra.mxu0 0.0
    %213 = vmatprep.subr.mxu0 0.0
    %214 = vmatpush1.xpose.msra.mxu0 0.0
    %215 = vmatprep.subr.mxu0 0.0
    %216 = vmatpush1.xpose.msra.mxu0 0.0
    %217 = vmatprep.subr.mxu0 0.0
    %218 = vmatpush1.xpose.msra.mxu0 0.0
    %219 = vmatprep.subr.mxu0 0.0
    %220 = vmatpush1.xpose.msra.mxu0 0.0
    %221 = vmatprep.subr.mxu0 0.0
    %222 = vmatpush1.xpose.msra.mxu0 0.0
    %223 = vmatprep.subr.mxu0 0.0
    %224 = vmatpush1.xpose.msra.mxu0 0.0
    %225 = vmatprep.subr.mxu0 0.0
    %226 = vmatpush1.xpose.msra.mxu0 0.0
    %227 = vmatprep.subr.mxu0 0.0
    %228 = vmatpush1.xpose.msra.mxu0 0.0
    %229 = vmatprep.subr.mxu0 0.0
    %230 = vmatpush1.xpose.msra.mxu0 0.0
    %231 = vmatprep.subr.mxu0 0.0
    %232 = vmatpush1.xpose.msra.mxu0 0.0
    %233 = vmatprep.subr.mxu0 0.0
    %234 = vmatpush1.xpose.msra.mxu0 0.0
    %235 = vmatprep.subr.mxu0 0.0
    %236 = vmatpush1.xpose.msra.mxu0 0.0
    %237 = vmatprep.mubr.f32.mxu0 0.0
    %238 = vmatmul.mubr.f32.gmra.mrb[0].mxu0 %v165
    %v239 = vpop.f32.mrb[0].mxu0
    %v240 = vadd.f32 0.0, %v239
    %v241 = vpop.f32.mrb[0].mxu0
    %242 = vmatprep.mubr.f32.mxu0 0.0
    %243 = vmatmul.mubr.f32.gmra.mrb[0].mxu0 %v168
    %v244 = vpop.f32.mrb[0].mxu0
    %v245 = vadd.f32 0.0, %v244
    %v246 = vpop.f32.mrb[0].mxu0
    %247 = vdwg.mxu0
    %v248 = vld [vmem:[%s12] sm:$0xff]
    %vm249 = vcmask 130048
    %v251 = vsel %vm249, %v248, 0
    %253 = vmatprep.subr.mxu0 0.0
    %254 = vmatpush1.msra.mxu0 %v240
    %255 = vmatprep.subr.mxu0 0.0
    %256 = vmatpush1.msra.mxu0 %v245
    %257 = vmatprep.subr.mxu0 0.0
    %258 = vmatpush1.msra.mxu0 0.0
    %259 = vmatprep.subr.mxu0 0.0
    %260 = vmatpush1.msra.mxu0 0.0
    %261 = vmatprep.subr.mxu0 0.0
    %262 = vmatpush1.msra.mxu0 0.0
    %263 = vmatprep.subr.mxu0 0.0
    %264 = vmatpush1.msra.mxu0 0.0
    %265 = vmatprep.subr.mxu0 0.0
    %266 = vmatpush1.msra.mxu0 0.0
    %267 = vmatprep.subr.mxu0 0.0
    %268 = vmatpush1.msra.mxu0 0.0
    %269 = vmatprep.subr.mxu0 0.0
    %270 = vmatpush1.msra.mxu0 0.0
    %271 = vmatprep.subr.mxu0 0.0
    %272 = vmatpush1.msra.mxu0 0.0
    %273 = vmatprep.subr.mxu0 0.0
    %274 = vmatpush1.msra.mxu0 0.0
    %275 = vmatprep.subr.mxu0 0.0
    %276 = vmatpush1.msra.mxu0 0.0
    %277 = vmatprep.subr.mxu0 0.0
    %278 = vmatpush1.msra.mxu0 0.0
    %279 = vmatprep.subr.mxu0 0.0
    %280 = vmatpush1.msra.mxu0 0.0
    %281 = vmatprep.subr.mxu0 0.0
    %282 = vmatpush1.msra.mxu0 0.0
    %283 = vmatprep.subr.mxu0 0.0
    %284 = vmatpush1.msra.mxu0 0.0
    %285 = vmatprep.subr.mxu0 0.0
    %286 = vmatpush1.msra.mxu0 0.0
    %287 = vmatprep.subr.mxu0 0.0
    %288 = vmatpush1.msra.mxu0 0.0
    %289 = vmatprep.subr.mxu0 0.0
    %290 = vmatpush1.msra.mxu0 0.0
    %291 = vmatprep.subr.mxu0 0.0
    %292 = vmatpush1.msra.mxu0 0.0
    %293 = vmatprep.subr.mxu0 0.0
    %294 = vmatpush1.msra.mxu0 0.0
    %295 = vmatprep.subr.mxu0 0.0
    %296 = vmatpush1.msra.mxu0 0.0
    %297 = vmatprep.subr.mxu0 0.0
    %298 = vmatpush1.msra.mxu0 0.0
    %299 = vmatprep.subr.mxu0 0.0
    %300 = vmatpush1.msra.mxu0 0.0
    %301 = vmatprep.subr.mxu0 0.0
    %302 = vmatpush1.msra.mxu0 0.0
    %303 = vmatprep.subr.mxu0 0.0
    %304 = vmatpush1.msra.mxu0 0.0
    %305 = vmatprep.subr.mxu0 0.0
    %306 = vmatpush1.msra.mxu0 0.0
    %307 = vmatprep.subr.mxu0 0.0
    %308 = vmatpush1.msra.mxu0 0.0
    %309 = vmatprep.subr.mxu0 0.0
    %310 = vmatpush1.msra.mxu0 0.0
    %311 = vmatprep.subr.mxu0 0.0
    %312 = vmatpush1.msra.mxu0 0.0
    %313 = vmatprep.subr.mxu0 0.0
    %314 = vmatpush1.msra.mxu0 0.0
    %315 = vmatprep.subr.mxu0 0.0
    %316 = vmatpush1.msra.mxu0 0.0
    %317 = vmatprep.mubr.f32.mxu0 0.0
    %318 = vmatmul.mubr.f32.gmra.mrb[0].mxu0 %v251
    %v319 = vpop.f32.mrb[0].mxu0
    %v320 = vadd.f32 0.0, %v319
    %v321 = vpop.f32.mrb[0].mxu0
    %322 = vdwg.mxu0
    %v323 = vmul.f32 %v320, 0.03125
    %v324 = vld [vmem:[%s13] sm:$0xff]
    %v325 = vld [vmem:[%s13 + $0x8] sm:$0xff]
    %vm326 = vcmask 64512
    %v328 = vsel %vm326, %v324, 0
    %v331 = vsel %vm326, %v325, 0
    %333 = vmatprep.subr.mxu0 0.0
    %334 = vmatpush1.msra.mxu0 %v323
    %335 = vmatprep.subr.mxu0 0.0
    %336 = vmatpush1.msra.mxu0 0.0
    %337 = vmatprep.subr.mxu0 0.0
    %338 = vmatpush1.msra.mxu0 0.0
    %339 = vmatprep.subr.mxu0 0.0
    %340 = vmatpush1.msra.mxu0 0.0
    %341 = vmatprep.subr.mxu0 0.0
    %342 = vmatpush1.msra.mxu0 0.0
    %343 = vmatprep.subr.mxu0 0.0
    %344 = vmatpush1.msra.mxu0 0.0
    %345 = vmatprep.subr.mxu0 0.0
    %346 = vmatpush1.msra.mxu0 0.0
    %347 = vmatprep.subr.mxu0 0.0
    %348 = vmatpush1.msra.mxu0 0.0
    %349 = vmatprep.subr.mxu0 0.0
    %350 = vmatpush1.msra.mxu0 0.0
    %351 = vmatprep.subr.mxu0 0.0
    %352 = vmatpush1.msra.mxu0 0.0
    %353 = vmatprep.subr.mxu0 0.0
    %354 = vmatpush1.msra.mxu0 0.0
    %355 = vmatprep.subr.mxu0 0.0
    %356 = vmatpush1.msra.mxu0 0.0
    %357 = vmatprep.subr.mxu0 0.0
    %358 = vmatpush1.msra.mxu0 0.0
    %359 = vmatprep.subr.mxu0 0.0
    %360 = vmatpush1.msra.mxu0 0.0
    %361 = vmatprep.subr.mxu0 0.0
    %362 = vmatpush1.msra.mxu0 0.0
    %363 = vmatprep.subr.mxu0 0.0
    %364 = vmatpush1.msra.mxu0 0.0
    %365 = vmatprep.subr.mxu0 0.0
    %366 = vmatpush1.msra.mxu0 0.0
    %367 = vmatprep.subr.mxu0 0.0
    %368 = vmatpush1.msra.mxu0 0.0
    %369 = vmatprep.subr.mxu0 0.0
    %370 = vmatpush1.msra.mxu0 0.0
    %371 = vmatprep.subr.mxu0 0.0
    %372 = vmatpush1.msra.mxu0 0.0
    %373 = vmatprep.subr.mxu0 0.0
    %374 = vmatpush1.msra.mxu0 0.0
    %375 = vmatprep.subr.mxu0 0.0
    %376 = vmatpush1.msra.mxu0 0.0
    %377 = vmatprep.subr.mxu0 0.0
    %378 = vmatpush1.msra.mxu0 0.0
    %379 = vmatprep.subr.mxu0 0.0
    %380 = vmatpush1.msra.mxu0 0.0
    %381 = vmatprep.subr.mxu0 0.0
    %382 = vmatpush1.msra.mxu0 0.0
    %383 = vmatprep.subr.mxu0 0.0
    %384 = vmatpush1.msra.mxu0 0.0
    %385 = vmatprep.subr.mxu0 0.0
    %386 = vmatpush1.msra.mxu0 0.0
    %387 = vmatprep.subr.mxu0 0.0
    %388 = vmatpush1.msra.mxu0 0.0
    %389 = vmatprep.subr.mxu0 0.0
    %390 = vmatpush1.msra.mxu0 0.0
    %391 = vmatprep.subr.mxu0 0.0
    %392 = vmatpush1.msra.mxu0 0.0
    %393 = vmatprep.subr.mxu0 0.0
    %394 = vmatpush1.msra.mxu0 0.0
    %395 = vmatprep.subr.mxu0 0.0
    %396 = vmatpush1.msra.mxu0 0.0
    %397 = vmatprep.mubr.f32.mxu0 0.0
    %398 = vmatmul.mubr.f32.gmra.mrb[0].mxu0 %v328
    %v399 = vpop.f32.mrb[0].mxu0
    %v400 = vadd.f32 0.0, %v399
    %v401 = vpop.f32.mrb[0].mxu0
    %402 = vmatprep.mubr.f32.mxu0 0.0
    %403 = vmatmul.mubr.f32.gmra.mrb[0].mxu0 %v331
    %v404 = vpop.f32.mrb[0].mxu0
    %v405 = vadd.f32 0.0, %v404
    %v406 = vpop.f32.mrb[0].mxu0
    %407 = vdwg.mxu0
    %vm408 = vcmask 15360
    %v410 = vsel %vm408, %v400, 0
    %v413 = vsel %vm408, %v405, 0
    %vm415 = vcmask 1041408
    %v416 = vsel %vm415, %v54, 0
    %418 = vmatprep.subr.mxu0 0.0
    %419 = vmatpush1.msra.mxu0 %v416
    %420 = vmatprep.subr.mxu0 0.0
    %421 = vmatpush1.msra.mxu0 0.0
    %422 = vmatprep.subr.mxu0 0.0
    %423 = vmatpush1.msra.mxu0 0.0
    %424 = vmatprep.subr.mxu0 0.0
    %425 = vmatpush1.msra.mxu0 0.0
    %426 = vmatprep.subr.mxu0 0.0
    %427 = vmatpush1.msra.mxu0 0.0
    %428 = vmatprep.subr.mxu0 0.0
    %429 = vmatpush1.msra.mxu0 0.0
    %430 = vmatprep.subr.mxu0 0.0
    %431 = vmatpush1.msra.mxu0 0.0
    %432 = vmatprep.subr.mxu0 0.0
    %433 = vmatpush1.msra.mxu0 0.0
    %434 = vmatprep.subr.mxu0 0.0
    %435 = vmatpush1.msra.mxu0 0.0
    %436 = vmatprep.subr.mxu0 0.0
    %437 = vmatpush1.msra.mxu0 0.0
    %438 = vmatprep.subr.mxu0 0.0
    %439 = vmatpush1.msra.mxu0 0.0
    %440 = vmatprep.subr.mxu0 0.0
    %441 = vmatpush1.msra.mxu0 0.0
    %442 = vmatprep.subr.mxu0 0.0
    %443 = vmatpush1.msra.mxu0 0.0
    %444 = vmatprep.subr.mxu0 0.0
    %445 = vmatpush1.msra.mxu0 0.0
    %446 = vmatprep.subr.mxu0 0.0
    %447 = vmatpush1.msra.mxu0 0.0
    %448 = vmatprep.subr.mxu0 0.0
    %449 = vmatpush1.msra.mxu0 0.0
    %450 = vmatprep.subr.mxu0 0.0
    %451 = vmatpush1.msra.mxu0 0.0
    %452 = vmatprep.subr.mxu0 0.0
    %453 = vmatpush1.msra.mxu0 0.0
    %454 = vmatprep.subr.mxu0 0.0
    %455 = vmatpush1.msra.mxu0 0.0
    %456 = vmatprep.subr.mxu0 0.0
    %457 = vmatpush1.msra.mxu0 0.0
    %458 = vmatprep.subr.mxu0 0.0
    %459 = vmatpush1.msra.mxu0 0.0
    %460 = vmatprep.subr.mxu0 0.0
    %461 = vmatpush1.msra.mxu0 0.0
    %462 = vmatprep.subr.mxu0 0.0
    %463 = vmatpush1.msra.mxu0 0.0
    %464 = vmatprep.subr.mxu0 0.0
    %465 = vmatpush1.msra.mxu0 0.0
    %466 = vmatprep.subr.mxu0 0.0
    %467 = vmatpush1.msra.mxu0 0.0
    %468 = vmatprep.subr.mxu0 0.0
    %469 = vmatpush1.msra.mxu0 0.0
    %470 = vmatprep.subr.mxu0 0.0
    %471 = vmatpush1.msra.mxu0 0.0
    %472 = vmatprep.subr.mxu0 0.0
    %473 = vmatpush1.msra.mxu0 0.0
    %474 = vmatprep.subr.mxu0 0.0
    %475 = vmatpush1.msra.mxu0 0.0
    %476 = vmatprep.subr.mxu0 0.0
    %477 = vmatpush1.msra.mxu0 0.0
    %478 = vmatprep.subr.mxu0 0.0
    %479 = vmatpush1.msra.mxu0 0.0
    %480 = vmatprep.subr.mxu0 0.0
    %481 = vmatpush1.msra.mxu0 0.0
    %482 = vmatprep.mubr.f32.mxu0 0.0
    %483 = vmatmul.mubr.f32.gmra.mrb[0].mxu0 %v410
    %v484 = vpop.f32.mrb[0].mxu0
    %v485 = vadd.f32 0.0, %v484
    %v486 = vpop.f32.mrb[0].mxu0
    %487 = vmatprep.mubr.f32.mxu0 0.0
    %488 = vmatmul.mubr.f32.gmra.mrb[0].mxu0 %v413
    %v489 = vpop.f32.mrb[0].mxu0
    %v490 = vadd.f32 0.0, %v489
    %v491 = vpop.f32.mrb[0].mxu0
    %492 = vdwg.mxu0
    %v493 = vsub.f32 %v151, %v485
    %v494 = vsub.f32 %v156, %v490
    %v495 = vmul.f32 %v493, %v493
    %v496 = vmul.f32 %v494, %v494
    %v498 = vsel %vm163, %v495, 0
    %v501 = vsel %vm163, %v496, 0
    %503 = vmatprep.subr.mxu0 0.0
    %504 = vmatpush1.xpose.msra.mxu0 %v171
    %505 = vmatprep.subr.mxu0 0.0
    %506 = vmatpush1.xpose.msra.mxu0 0.0
    %507 = vmatprep.subr.mxu0 0.0
    %508 = vmatpush1.xpose.msra.mxu0 0.0
    %509 = vmatprep.subr.mxu0 0.0
    %510 = vmatpush1.xpose.msra.mxu0 0.0
    %511 = vmatprep.subr.mxu0 0.0
    %512 = vmatpush1.xpose.msra.mxu0 0.0
    %513 = vmatprep.subr.mxu0 0.0
    %514 = vmatpush1.xpose.msra.mxu0 0.0
    %515 = vmatprep.subr.mxu0 0.0
    %516 = vmatpush1.xpose.msra.mxu0 0.0
    %517 = vmatprep.subr.mxu0 0.0
    %518 = vmatpush1.xpose.msra.mxu0 0.0
    %519 = vmatprep.subr.mxu0 0.0
    %520 = vmatpush1.xpose.msra.mxu0 0.0
    %521 = vmatprep.subr.mxu0 0.0
    %522 = vmatpush1.xpose.msra.mxu0 0.0
    %523 = vmatprep.subr.mxu0 0.0
    %524 = vmatpush1.xpose.msra.mxu0 0.0
    %525 = vmatprep.subr.mxu0 0.0
    %526 = vmatpush1.xpose.msra.mxu0 0.0
    %527 = vmatprep.subr.mxu0 0.0
    %528 = vmatpush1.xpose.msra.mxu0 0.0
    %529 = vmatprep.subr.mxu0 0.0
    %530 = vmatpush1.xpose.msra.mxu0 0.0
    %531 = vmatprep.subr.mxu0 0.0
    %532 = vmatpush1.xpose.msra.mxu0 0.0
    %533 = vmatprep.subr.mxu0 0.0
    %534 = vmatpush1.xpose.msra.mxu0 0.0
    %535 = vmatprep.subr.mxu0 0.0
    %536 = vmatpush1.xpose.msra.mxu0 0.0
    %537 = vmatprep.subr.mxu0 0.0
    %538 = vmatpush1.xpose.msra.mxu0 0.0
    %539 = vmatprep.subr.mxu0 0.0
    %540 = vmatpush1.xpose.msra.mxu0 0.0
    %541 = vmatprep.subr.mxu0 0.0
    %542 = vmatpush1.xpose.msra.mxu0 0.0
    %543 = vmatprep.subr.mxu0 0.0
    %544 = vmatpush1.xpose.msra.mxu0 0.0
    %545 = vmatprep.subr.mxu0 0.0
    %546 = vmatpush1.xpose.msra.mxu0 0.0
    %547 = vmatprep.subr.mxu0 0.0
    %548 = vmatpush1.xpose.msra.mxu0 0.0
    %549 = vmatprep.subr.mxu0 0.0
    %550 = vmatpush1.xpose.msra.mxu0 0.0
    %551 = vmatprep.subr.mxu0 0.0
    %552 = vmatpush1.xpose.msra.mxu0 0.0
    %553 = vmatprep.subr.mxu0 0.0
    %554 = vmatpush1.xpose.msra.mxu0 0.0
    %555 = vmatprep.subr.mxu0 0.0
    %556 = vmatpush1.xpose.msra.mxu0 0.0
    %557 = vmatprep.subr.mxu0 0.0
    %558 = vmatpush1.xpose.msra.mxu0 0.0
    %559 = vmatprep.subr.mxu0 0.0
    %560 = vmatpush1.xpose.msra.mxu0 0.0
    %561 = vmatprep.subr.mxu0 0.0
    %562 = vmatpush1.xpose.msra.mxu0 0.0
    %563 = vmatprep.subr.mxu0 0.0
    %564 = vmatpush1.xpose.msra.mxu0 0.0
    %565 = vmatprep.subr.mxu0 0.0
    %566 = vmatpush1.xpose.msra.mxu0 0.0
    %567 = vmatprep.mubr.f32.mxu0 0.0
    %568 = vmatmul.mubr.f32.gmra.mrb[0].mxu0 %v498
    %v569 = vpop.f32.mrb[0].mxu0
    %v570 = vadd.f32 0.0, %v569
    %v571 = vpop.f32.mrb[0].mxu0
    %572 = vmatprep.mubr.f32.mxu0 0.0
    %573 = vmatmul.mubr.f32.gmra.mrb[0].mxu0 %v501
    %v574 = vpop.f32.mrb[0].mxu0
    %v575 = vadd.f32 0.0, %v574
    %v576 = vpop.f32.mrb[0].mxu0
    %577 = vdwg.mxu0
    %578 = vmatprep.subr.mxu0 0.0
    %579 = vmatpush1.msra.mxu0 %v570
    %580 = vmatprep.subr.mxu0 0.0
    %581 = vmatpush1.msra.mxu0 %v575
    %582 = vmatprep.subr.mxu0 0.0
    %583 = vmatpush1.msra.mxu0 0.0
    %584 = vmatprep.subr.mxu0 0.0
    %585 = vmatpush1.msra.mxu0 0.0
    %586 = vmatprep.subr.mxu0 0.0
    %587 = vmatpush1.msra.mxu0 0.0
    %588 = vmatprep.subr.mxu0 0.0
    %589 = vmatpush1.msra.mxu0 0.0
    %590 = vmatprep.subr.mxu0 0.0
    %591 = vmatpush1.msra.mxu0 0.0
    %592 = vmatprep.subr.mxu0 0.0
    %593 = vmatpush1.msra.mxu0 0.0
    %594 = vmatprep.subr.mxu0 0.0
    %595 = vmatpush1.msra.mxu0 0.0
    %596 = vmatprep.subr.mxu0 0.0
    %597 = vmatpush1.msra.mxu0 0.0
    %598 = vmatprep.subr.mxu0 0.0
    %599 = vmatpush1.msra.mxu0 0.0
    %600 = vmatprep.subr.mxu0 0.0
    %601 = vmatpush1.msra.mxu0 0.0
    %602 = vmatprep.subr.mxu0 0.0
    %603 = vmatpush1.msra.mxu0 0.0
    %604 = vmatprep.subr.mxu0 0.0
    %605 = vmatpush1.msra.mxu0 0.0
    %606 = vmatprep.subr.mxu0 0.0
    %607 = vmatpush1.msra.mxu0 0.0
    %608 = vmatprep.subr.mxu0 0.0
    %609 = vmatpush1.msra.mxu0 0.0
    %610 = vmatprep.subr.mxu0 0.0
    %611 = vmatpush1.msra.mxu0 0.0
    %612 = vmatprep.subr.mxu0 0.0
    %613 = vmatpush1.msra.mxu0 0.0
    %614 = vmatprep.subr.mxu0 0.0
    %615 = vmatpush1.msra.mxu0 0.0
    %616 = vmatprep.subr.mxu0 0.0
    %617 = vmatpush1.msra.mxu0 0.0
    %618 = vmatprep.subr.mxu0 0.0
    %619 = vmatpush1.msra.mxu0 0.0
    %620 = vmatprep.subr.mxu0 0.0
    %621 = vmatpush1.msra.mxu0 0.0
    %622 = vmatprep.subr.mxu0 0.0
    %623 = vmatpush1.msra.mxu0 0.0
    %624 = vmatprep.subr.mxu0 0.0
    %625 = vmatpush1.msra.mxu0 0.0
    %626 = vmatprep.subr.mxu0 0.0
    %627 = vmatpush1.msra.mxu0 0.0
    %628 = vmatprep.subr.mxu0 0.0
    %629 = vmatpush1.msra.mxu0 0.0
    %630 = vmatprep.subr.mxu0 0.0
    %631 = vmatpush1.msra.mxu0 0.0
    %632 = vmatprep.subr.mxu0 0.0
    %633 = vmatpush1.msra.mxu0 0.0
    %634 = vmatprep.subr.mxu0 0.0
    %635 = vmatpush1.msra.mxu0 0.0
    %636 = vmatprep.subr.mxu0 0.0
    %637 = vmatpush1.msra.mxu0 0.0
    %638 = vmatprep.subr.mxu0 0.0
    %639 = vmatpush1.msra.mxu0 0.0
    %640 = vmatprep.subr.mxu0 0.0
    %641 = vmatpush1.msra.mxu0 0.0
    %642 = vmatprep.mubr.f32.mxu0 0.0
    %643 = vmatmul.mubr.f32.gmra.mrb[0].mxu0 %v251
    %v644 = vpop.f32.mrb[0].mxu0
    %v645 = vadd.f32 0.0, %v644
    %v646 = vpop.f32.mrb[0].mxu0
    %647 = vdwg.mxu0
    %v648 = vmul.f32 %v645, 0.03125
    %649 = vmatprep.subr.mxu0 0.0
    %650 = vmatpush1.msra.mxu0 %v648
    %651 = vmatprep.subr.mxu0 0.0
    %652 = vmatpush1.msra.mxu0 0.0
    %653 = vmatprep.subr.mxu0 0.0
    %654 = vmatpush1.msra.mxu0 0.0
    %655 = vmatprep.subr.mxu0 0.0
    %656 = vmatpush1.msra.mxu0 0.0
    %657 = vmatprep.subr.mxu0 0.0
    %658 = vmatpush1.msra.mxu0 0.0
    %659 = vmatprep.subr.mxu0 0.0
    %660 = vmatpush1.msra.mxu0 0.0
    %661 = vmatprep.subr.mxu0 0.0
    %662 = vmatpush1.msra.mxu0 0.0
    %663 = vmatprep.subr.mxu0 0.0
    %664 = vmatpush1.msra.mxu0 0.0
    %665 = vmatprep.subr.mxu0 0.0
    %666 = vmatpush1.msra.mxu0 0.0
    %667 = vmatprep.subr.mxu0 0.0
    %668 = vmatpush1.msra.mxu0 0.0
    %669 = vmatprep.subr.mxu0 0.0
    %670 = vmatpush1.msra.mxu0 0.0
    %671 = vmatprep.subr.mxu0 0.0
    %672 = vmatpush1.msra.mxu0 0.0
    %673 = vmatprep.subr.mxu0 0.0
    %674 = vmatpush1.msra.mxu0 0.0
    %675 = vmatprep.subr.mxu0 0.0
    %676 = vmatpush1.msra.mxu0 0.0
    %677 = vmatprep.subr.mxu0 0.0
    %678 = vmatpush1.msra.mxu0 0.0
    %679 = vmatprep.subr.mxu0 0.0
    %680 = vmatpush1.msra.mxu0 0.0
    %681 = vmatprep.subr.mxu0 0.0
    %682 = vmatpush1.msra.mxu0 0.0
    %683 = vmatprep.subr.mxu0 0.0
    %684 = vmatpush1.msra.mxu0 0.0
    %685 = vmatprep.subr.mxu0 0.0
    %686 = vmatpush1.msra.mxu0 0.0
    %687 = vmatprep.subr.mxu0 0.0
    %688 = vmatpush1.msra.mxu0 0.0
    %689 = vmatprep.subr.mxu0 0.0
    %690 = vmatpush1.msra.mxu0 0.0
    %691 = vmatprep.subr.mxu0 0.0
    %692 = vmatpush1.msra.mxu0 0.0
    %693 = vmatprep.subr.mxu0 0.0
    %694 = vmatpush1.msra.mxu0 0.0
    %695 = vmatprep.subr.mxu0 0.0
    %696 = vmatpush1.msra.mxu0 0.0
    %697 = vmatprep.subr.mxu0 0.0
    %698 = vmatpush1.msra.mxu0 0.0
    %699 = vmatprep.subr.mxu0 0.0
    %700 = vmatpush1.msra.mxu0 0.0
    %701 = vmatprep.subr.mxu0 0.0
    %702 = vmatpush1.msra.mxu0 0.0
    %703 = vmatprep.subr.mxu0 0.0
    %704 = vmatpush1.msra.mxu0 0.0
    %705 = vmatprep.subr.mxu0 0.0
    %706 = vmatpush1.msra.mxu0 0.0
    %707 = vmatprep.subr.mxu0 0.0
    %708 = vmatpush1.msra.mxu0 0.0
    %709 = vmatprep.subr.mxu0 0.0
    %710 = vmatpush1.msra.mxu0 0.0
    %711 = vmatprep.subr.mxu0 0.0
    %712 = vmatpush1.msra.mxu0 0.0
    %713 = vmatprep.mubr.f32.mxu0 0.0
    %714 = vmatmul.mubr.f32.gmra.mrb[0].mxu0 %v328
    %v715 = vpop.f32.mrb[0].mxu0
    %v716 = vadd.f32 1e-05, %v715
    %v717 = vpop.f32.mrb[0].mxu0
    %718 = vmatprep.mubr.f32.mxu0 0.0
    %719 = vmatmul.mubr.f32.gmra.mrb[0].mxu0 %v331
    %v720 = vpop.f32.mrb[0].mxu0
    %v721 = vadd.f32 1e-05, %v720
    %v722 = vpop.f32.mrb[0].mxu0
    %723 = vdwg.mxu0
    %v724 = vrsqrt.pop %v716
    %v725 = vrsqrt.pop %v721
    %v727 = vsel %vm408, %v724, 0
    %v730 = vsel %vm408, %v725, 0
    %732 = vmatprep.subr.mxu0 0.0
    %733 = vmatpush1.msra.mxu0 %v416
    %734 = vmatprep.subr.mxu0 0.0
    %735 = vmatpush1.msra.mxu0 0.0
    %736 = vmatprep.subr.mxu0 0.0
    %737 = vmatpush1.msra.mxu0 0.0
    %738 = vmatprep.subr.mxu0 0.0
    %739 = vmatpush1.msra.mxu0 0.0
    %740 = vmatprep.subr.mxu0 0.0
    %741 = vmatpush1.msra.mxu0 0.0
    %742 = vmatprep.subr.mxu0 0.0
    %743 = vmatpush1.msra.mxu0 0.0
    %744 = vmatprep.subr.mxu0 0.0
    %745 = vmatpush1.msra.mxu0 0.0
    %746 = vmatprep.subr.mxu0 0.0
    %747 = vmatpush1.msra.mxu0 0.0
    %748 = vmatprep.subr.mxu0 0.0
    %749 = vmatpush1.msra.mxu0 0.0
    %750 = vmatprep.subr.mxu0 0.0
    %751 = vmatpush1.msra.mxu0 0.0
    %752 = vmatprep.subr.mxu0 0.0
    %753 = vmatpush1.msra.mxu0 0.0
    %754 = vmatprep.subr.mxu0 0.0
    %755 = vmatpush1.msra.mxu0 0.0
    %756 = vmatprep.subr.mxu0 0.0
    %757 = vmatpush1.msra.mxu0 0.0
    %758 = vmatprep.subr.mxu0 0.0
    %759 = vmatpush1.msra.mxu0 0.0
    %760 = vmatprep.subr.mxu0 0.0
    %761 = vmatpush1.msra.mxu0 0.0
    %762 = vmatprep.subr.mxu0 0.0
    %763 = vmatpush1.msra.mxu0 0.0
    %764 = vmatprep.subr.mxu0 0.0
    %765 = vmatpush1.msra.mxu0 0.0
    %766 = vmatprep.subr.mxu0 0.0
    %767 = vmatpush1.msra.mxu0 0.0
    %768 = vmatprep.subr.mxu0 0.0
    %769 = vmatpush1.msra.mxu0 0.0
    %770 = vmatprep.subr.mxu0 0.0
    %771 = vmatpush1.msra.mxu0 0.0
    %772 = vmatprep.subr.mxu0 0.0
    %773 = vmatpush1.msra.mxu0 0.0
    %774 = vmatprep.subr.mxu0 0.0
    %775 = vmatpush1.msra.mxu0 0.0
    %776 = vmatprep.subr.mxu0 0.0
    %777 = vmatpush1.msra.mxu0 0.0
    %778 = vmatprep.subr.mxu0 0.0
    %779 = vmatpush1.msra.mxu0 0.0
    %780 = vmatprep.subr.mxu0 0.0
    %781 = vmatpush1.msra.mxu0 0.0
    %782 = vmatprep.subr.mxu0 0.0
    %783 = vmatpush1.msra.mxu0 0.0
    %784 = vmatprep.subr.mxu0 0.0
    %785 = vmatpush1.msra.mxu0 0.0
    %786 = vmatprep.subr.mxu0 0.0
    %787 = vmatpush1.msra.mxu0 0.0
    %788 = vmatprep.subr.mxu0 0.0
    %789 = vmatpush1.msra.mxu0 0.0
    %790 = vmatprep.subr.mxu0 0.0
    %791 = vmatpush1.msra.mxu0 0.0
    %792 = vmatprep.subr.mxu0 0.0
    %793 = vmatpush1.msra.mxu0 0.0
    %794 = vmatprep.subr.mxu0 0.0
    %795 = vmatpush1.msra.mxu0 0.0
    %796 = vmatprep.mubr.f32.mxu0 0.0
    %797 = vmatmul.mubr.f32.gmra.mrb[0].mxu0 %v727
    %v798 = vpop.f32.mrb[0].mxu0
    %v799 = vadd.f32 0.0, %v798
    %v800 = vpop.f32.mrb[0].mxu0
    %801 = vmatprep.mubr.f32.mxu0 0.0
    %802 = vmatmul.mubr.f32.gmra.mrb[0].mxu0 %v730
    %v803 = vpop.f32.mrb[0].mxu0
    %v804 = vadd.f32 0.0, %v803
    %v805 = vpop.f32.mrb[0].mxu0
    %806 = vdwg.mxu0
    %v807 = vmul.f32 %v493, %v799
    %v808 = vmul.f32 %v494, %v804
    %810 = vset.pattern.permute.xlu0 0
    %811 = vperm.xlu0 %810, %v159
    %v812 = vpop.permute.xlu0 %811
    %815 = vset.pattern.permute.xlu0 0
    %816 = vperm.xlu0 %815, %v160
    %v817 = vpop.permute.xlu0 %816
    %v819 = vmul.f32 %v807, %v812
    %v820 = vmul.f32 %v808, %v817
    %822 = vset.pattern.permute.xlu0 0
    %823 = vperm.xlu0 %822, %v161
    %v824 = vpop.permute.xlu0 %823
    %827 = vset.pattern.permute.xlu0 0
    %828 = vperm.xlu0 %827, %v162
    %v829 = vpop.permute.xlu0 %828
    %v831 = vadd.f32 %v819, %v824
    %v832 = vadd.f32 %v820, %v829
    %v833 = vmin.f32 %v831, 20.0
    %v834 = vmin.f32 %v832, 20.0
    %v835 = vmul.f32 %v833, 1.442695
    %v836 = vpow.pop %v835
    %v837 = vmul.f32 %v834, 1.442695
    %v838 = vpow.pop %v837
    %v839 = vadd.f32 %v836, 2.0
    %v840 = vadd.f32 %v838, 2.0
    %v841 = vmul.f32 %v836, %v839
    %v842 = vmul.f32 %v838, %v840
    %v843 = vadd.f32 %v841, 2.0
    %v844 = vadd.f32 %v842, 2.0
    %v845 = vrcp.pop %v843
    %v846 = vmul.f32 %v841, %v845
    %v847 = vrcp.pop %v844
    %v848 = vmul.f32 %v842, %v847
    %v849 = vmul.f32 %v831, %v846
    %v850 = vmul.f32 %v832, %v848
    %v851 = vld [vmem:[%s1] sm:$0x3]
    %852 = vxpose.xlu0.b32.start [1/16] %v851, 128
    %853 = vxpose.xlu0.b32.cont [2/16] 0.0, 128
    %854 = vxpose.xlu0.b32.cont [3/16] 0.0, 128
    %855 = vxpose.xlu0.b32.cont [4/16] 0.0, 128
    %856 = vxpose.xlu0.b32.cont [5/16] 0.0, 128
    %857 = vxpose.xlu0.b32.cont [6/16] 0.0, 128
    %858 = vxpose.xlu0.b32.cont [7/16] 0.0, 128
    %859 = vxpose.xlu0.b32.cont [8/16] 0.0, 128
    %860 = vxpose.xlu0.b32.cont [9/16] 0.0, 128
    %861 = vxpose.xlu0.b32.cont [10/16] 0.0, 128
    %862 = vxpose.xlu0.b32.cont [11/16] 0.0, 128
    %863 = vxpose.xlu0.b32.cont [12/16] 0.0, 128
    %864 = vxpose.xlu0.b32.cont [13/16] 0.0, 128
    %865 = vxpose.xlu0.b32.cont [14/16] 0.0, 128
    %866 = vxpose.xlu0.b32.cont [15/16] 0.0, 128
    %867 = vxpose.xlu0.b32.end [16/16] 0.0, 128
    %v868 = vpop.trf.xlu0
    %v869 = vpop.trf.xlu0
    %v870 = vpop.trf.xlu0
    %v871 = vpop.trf.xlu0
    %v872 = vpop.trf.xlu0
    %v873 = vpop.trf.xlu0
    %v874 = vpop.trf.xlu0
    %v875 = vpop.trf.xlu0
    %v876 = vpop.trf.xlu0
    %v877 = vpop.trf.xlu0
    %v878 = vpop.trf.xlu0
    %v879 = vpop.trf.xlu0
    %v880 = vpop.trf.xlu0
    %v881 = vpop.trf.xlu0
    %v882 = vpop.trf.xlu0
    %v883 = vpop.trf.xlu0
    %v885 = vsel %vm408, %v868, 0
    %v888 = vsel %vm408, %v869, 0
    %890 = vmatprep.subr.mxu0 0.0
    %891 = vmatpush1.msra.mxu0 %v416
    %892 = vmatprep.subr.mxu0 0.0
    %893 = vmatpush1.msra.mxu0 0.0
    %894 = vmatprep.subr.mxu0 0.0
    %895 = vmatpush1.msra.mxu0 0.0
    %896 = vmatprep.subr.mxu0 0.0
    %897 = vmatpush1.msra.mxu0 0.0
    %898 = vmatprep.subr.mxu0 0.0
    %899 = vmatpush1.msra.mxu0 0.0
    %900 = vmatprep.subr.mxu0 0.0
    %901 = vmatpush1.msra.mxu0 0.0
    %902 = vmatprep.subr.mxu0 0.0
    %903 = vmatpush1.msra.mxu0 0.0
    %904 = vmatprep.subr.mxu0 0.0
    %905 = vmatpush1.msra.mxu0 0.0
    %906 = vmatprep.subr.mxu0 0.0
    %907 = vmatpush1.msra.mxu0 0.0
    %908 = vmatprep.subr.mxu0 0.0
    %909 = vmatpush1.msra.mxu0 0.0
    %910 = vmatprep.subr.mxu0 0.0
    %911 = vmatpush1.msra.mxu0 0.0
    %912 = vmatprep.subr.mxu0 0.0
    %913 = vmatpush1.msra.mxu0 0.0
    %914 = vmatprep.subr.mxu0 0.0
    %915 = vmatpush1.msra.mxu0 0.0
    %916 = vmatprep.subr.mxu0 0.0
    %917 = vmatpush1.msra.mxu0 0.0
    %918 = vmatprep.subr.mxu0 0.0
    %919 = vmatpush1.msra.mxu0 0.0
    %920 = vmatprep.subr.mxu0 0.0
    %921 = vmatpush1.msra.mxu0 0.0
    %922 = vmatprep.subr.mxu0 0.0
    %923 = vmatpush1.msra.mxu0 0.0
    %924 = vmatprep.subr.mxu0 0.0
    %925 = vmatpush1.msra.mxu0 0.0
    %926 = vmatprep.subr.mxu0 0.0
    %927 = vmatpush1.msra.mxu0 0.0
    %928 = vmatprep.subr.mxu0 0.0
    %929 = vmatpush1.msra.mxu0 0.0
    %930 = vmatprep.subr.mxu0 0.0
    %931 = vmatpush1.msra.mxu0 0.0
    %932 = vmatprep.subr.mxu0 0.0
    %933 = vmatpush1.msra.mxu0 0.0
    %934 = vmatprep.subr.mxu0 0.0
    %935 = vmatpush1.msra.mxu0 0.0
    %936 = vmatprep.subr.mxu0 0.0
    %937 = vmatpush1.msra.mxu0 0.0
    %938 = vmatprep.subr.mxu0 0.0
    %939 = vmatpush1.msra.mxu0 0.0
    %940 = vmatprep.subr.mxu0 0.0
    %941 = vmatpush1.msra.mxu0 0.0
    %942 = vmatprep.subr.mxu0 0.0
    %943 = vmatpush1.msra.mxu0 0.0
    %944 = vmatprep.subr.mxu0 0.0
    %945 = vmatpush1.msra.mxu0 0.0
    %946 = vmatprep.subr.mxu0 0.0
    %947 = vmatpush1.msra.mxu0 0.0
    %948 = vmatprep.subr.mxu0 0.0
    %949 = vmatpush1.msra.mxu0 0.0
    %950 = vmatprep.subr.mxu0 0.0
    %951 = vmatpush1.msra.mxu0 0.0
    %952 = vmatprep.subr.mxu0 0.0
    %953 = vmatpush1.msra.mxu0 0.0
    %954 = vmatprep.mubr.f32.mxu0 0.0
    %955 = vmatmul.mubr.f32.gmra.mrb[0].mxu0 %v885
    %v956 = vpop.f32.mrb[0].mxu0
    %v957 = vadd.f32 0.0, %v956
    %v958 = vpop.f32.mrb[0].mxu0
    %959 = vmatprep.mubr.f32.mxu0 0.0
    %960 = vmatmul.mubr.f32.gmra.mrb[0].mxu0 %v888
    %v961 = vpop.f32.mrb[0].mxu0
    %v962 = vadd.f32 0.0, %v961
    %v963 = vpop.f32.mrb[0].mxu0
    %964 = vdwg.mxu0
    %v965 = vadd.f32 %v849, %v957
    %v966 = vadd.f32 %v850, %v962
    %969 = vrot.lane.b32.xlu0 %v965, 2
    %v970 = vpop.permute.xlu0 %969
    %971 = vrot.lane.b32.xlu0 %v966, 2
    %v972 = vpop.permute.xlu0 %971
    %vm975 = vcmask 277520
    %976 = vst.msk [vmem:[#allocation2] sm:$0xff] %vm975, %v970
    %977 = vst.msk [vmem:[#allocation2 + $0x8] sm:$0xff] %vm975, %v972
    %v978 = vld [vmem:[#allocation2] sm:$0xff]
    %v979 = vld [vmem:[#allocation2 + $0x8] sm:$0xff]
    %v980 = vadd.s32 %v55, 4294967294
    %vm981 = vcmp.ge.s32.totalorder %v980, 0
    %vm982 = vcmp.lt.s32.totalorder %v980, 16
    %vm983 = vmand %vm981, %vm982
    %v984 = vsel %vm983, 1, 0
    %v985 = vlaneseq
    %v986 = vshrl.u32 %v985, 7
    %v987 = vsub.s32 0, %v986
    %v988 = vrot.slane %v984, %v987
    %vm989 = vcmp.eq.s32.totalorder %v988, 1
    %v990 = vsel %vm989, %v978, 0.0
    %v991 = vsel %vm989, %v979, 0.0
    %v992 = vld [vmem:[%s8] sm:$0xff]
    %v993 = vld [vmem:[%s8 + $0x8] sm:$0xff]
    %v994 = vadd.s32 %v55, 4294967295
    %vm995 = vcmp.ge.s32.totalorder %v994, 0
    %vm996 = vcmp.lt.s32.totalorder %v994, 16
    %vm997 = vmand %vm995, %vm996
    %v998 = vsel %vm997, 1, 0
    %v999 = vlaneseq
    %v1000 = vshrl.u32 %v999, 7
    %v1001 = vsub.s32 0, %v1000
    %v1002 = vrot.slane %v998, %v1001
    %vm1003 = vcmp.eq.s32.totalorder %v1002, 1
    %1006 = vrot.lane.b32.xlu0 %v978, 127
    %v1007 = vpop.permute.xlu0 %1006
    %1008 = vrot.lane.b32.xlu0 %v979, 127
    %v1009 = vpop.permute.xlu0 %1008
    %v1012 = vsel %vm1003, %v1007, 0.0
    %v1013 = vsel %vm1003, %v1009, 0.0
    %s1014 = scalar_lea.vmem %s8, 16
    %v1015 = vld [vmem:[%s1014] sm:$0xff]
    %v1016 = vld [vmem:[%s1014 + $0x8] sm:$0xff]
    %v1018 = vsel %vm249, %v1015, 0
    %v1021 = vsel %vm249, %v1016, 0
    %1023 = vmatprep.subr.mxu0 0.0
    %1024 = vmatpush1.msra.mxu0 %v1012
    %1025 = vmatprep.subr.mxu0 0.0
    %1026 = vmatpush1.msra.mxu0 %v1013
    %1027 = vmatprep.subr.mxu0 0.0
    %1028 = vmatpush1.msra.mxu0 0.0
    %1029 = vmatprep.subr.mxu0 0.0
    %1030 = vmatpush1.msra.mxu0 0.0
    %1031 = vmatprep.subr.mxu0 0.0
    %1032 = vmatpush1.msra.mxu0 0.0
    %1033 = vmatprep.subr.mxu0 0.0
    %1034 = vmatpush1.msra.mxu0 0.0
    %1035 = vmatprep.subr.mxu0 0.0
    %1036 = vmatpush1.msra.mxu0 0.0
    %1037 = vmatprep.subr.mxu0 0.0
    %1038 = vmatpush1.msra.mxu0 0.0
    %1039 = vmatprep.subr.mxu0 0.0
    %1040 = vmatpush1.msra.mxu0 0.0
    %1041 = vmatprep.subr.mxu0 0.0
    %1042 = vmatpush1.msra.mxu0 0.0
    %1043 = vmatprep.subr.mxu0 0.0
    %1044 = vmatpush1.msra.mxu0 0.0
    %1045 = vmatprep.subr.mxu0 0.0
    %1046 = vmatpush1.msra.mxu0 0.0
    %1047 = vmatprep.subr.mxu0 0.0
    %1048 = vmatpush1.msra.mxu0 0.0
    %1049 = vmatprep.subr.mxu0 0.0
    %1050 = vmatpush1.msra.mxu0 0.0
    %1051 = vmatprep.subr.mxu0 0.0
    %1052 = vmatpush1.msra.mxu0 0.0
    %1053 = vmatprep.subr.mxu0 0.0
    %1054 = vmatpush1.msra.mxu0 0.0
    %1055 = vmatprep.subr.mxu0 0.0
    %1056 = vmatpush1.msra.mxu0 0.0
    %1057 = vmatprep.subr.mxu0 0.0
    %1058 = vmatpush1.msra.mxu0 0.0
    %1059 = vmatprep.subr.mxu0 0.0
    %1060 = vmatpush1.msra.mxu0 0.0
    %1061 = vmatprep.subr.mxu0 0.0
    %1062 = vmatpush1.msra.mxu0 0.0
    %1063 = vmatprep.subr.mxu0 0.0
    %1064 = vmatpush1.msra.mxu0 0.0
    %1065 = vmatprep.subr.mxu0 0.0
    %1066 = vmatpush1.msra.mxu0 0.0
    %1067 = vmatprep.subr.mxu0 0.0
    %1068 = vmatpush1.msra.mxu0 0.0
    %1069 = vmatprep.subr.mxu0 0.0
    %1070 = vmatpush1.msra.mxu0 0.0
    %1071 = vmatprep.subr.mxu0 0.0
    %1072 = vmatpush1.msra.mxu0 0.0
    %1073 = vmatprep.subr.mxu0 0.0
    %1074 = vmatpush1.msra.mxu0 0.0
    %1075 = vmatprep.subr.mxu0 0.0
    %1076 = vmatpush1.msra.mxu0 0.0
    %1077 = vmatprep.subr.mxu0 0.0
    %1078 = vmatpush1.msra.mxu0 0.0
    %1079 = vmatprep.subr.mxu0 0.0
    %1080 = vmatpush1.msra.mxu0 0.0
    %1081 = vmatprep.subr.mxu0 0.0
    %1082 = vmatpush1.msra.mxu0 0.0
    %1083 = vmatprep.subr.mxu0 0.0
    %1084 = vmatpush1.msra.mxu0 0.0
    %1085 = vmatprep.subr.mxu0 0.0
    %1086 = vmatpush1.msra.mxu0 0.0
    %1087 = vmatprep.mubr.f32.mxu0 0.0
    %1088 = vmatmul.mubr.f32.gmra.mrb[0].mxu0 %v1018
    %v1089 = vpop.f32.mrb[0].mxu0
    %v1090 = vadd.f32 0.0, %v1089
    %v1091 = vpop.f32.mrb[0].mxu0
    %1092 = vmatprep.mubr.f32.mxu0 0.0
    %1093 = vmatmul.mubr.f32.gmra.mrb[0].mxu0 %v1021
    %v1094 = vpop.f32.mrb[0].mxu0
    %v1095 = vadd.f32 0.0, %v1094
    %v1096 = vpop.f32.mrb[0].mxu0
    %1097 = vdwg.mxu0
    %v1099 = vsel %vm249, %v992, 0
    %v1102 = vsel %vm249, %v993, 0
    %1104 = vmatprep.subr.mxu0 0.0
    %1105 = vmatpush1.msra.mxu0 %v990
    %1106 = vmatprep.subr.mxu0 0.0
    %1107 = vmatpush1.msra.mxu0 %v991
    %1108 = vmatprep.subr.mxu0 0.0
    %1109 = vmatpush1.msra.mxu0 0.0
    %1110 = vmatprep.subr.mxu0 0.0
    %1111 = vmatpush1.msra.mxu0 0.0
    %1112 = vmatprep.subr.mxu0 0.0
    %1113 = vmatpush1.msra.mxu0 0.0
    %1114 = vmatprep.subr.mxu0 0.0
    %1115 = vmatpush1.msra.mxu0 0.0
    %1116 = vmatprep.subr.mxu0 0.0
    %1117 = vmatpush1.msra.mxu0 0.0
    %1118 = vmatprep.subr.mxu0 0.0
    %1119 = vmatpush1.msra.mxu0 0.0
    %1120 = vmatprep.subr.mxu0 0.0
    %1121 = vmatpush1.msra.mxu0 0.0
    %1122 = vmatprep.subr.mxu0 0.0
    %1123 = vmatpush1.msra.mxu0 0.0
    %1124 = vmatprep.subr.mxu0 0.0
    %1125 = vmatpush1.msra.mxu0 0.0
    %1126 = vmatprep.subr.mxu0 0.0
    %1127 = vmatpush1.msra.mxu0 0.0
    %1128 = vmatprep.subr.mxu0 0.0
    %1129 = vmatpush1.msra.mxu0 0.0
    %1130 = vmatprep.subr.mxu0 0.0
    %1131 = vmatpush1.msra.mxu0 0.0
    %1132 = vmatprep.subr.mxu0 0.0
    %1133 = vmatpush1.msra.mxu0 0.0
    %1134 = vmatprep.subr.mxu0 0.0
    %1135 = vmatpush1.msra.mxu0 0.0
    %1136 = vmatprep.subr.mxu0 0.0
    %1137 = vmatpush1.msra.mxu0 0.0
    %1138 = vmatprep.subr.mxu0 0.0
    %1139 = vmatpush1.msra.mxu0 0.0
    %1140 = vmatprep.subr.mxu0 0.0
    %1141 = vmatpush1.msra.mxu0 0.0
    %1142 = vmatprep.subr.mxu0 0.0
    %1143 = vmatpush1.msra.mxu0 0.0
    %1144 = vmatprep.subr.mxu0 0.0
    %1145 = vmatpush1.msra.mxu0 0.0
    %1146 = vmatprep.subr.mxu0 0.0
    %1147 = vmatpush1.msra.mxu0 0.0
    %1148 = vmatprep.subr.mxu0 0.0
    %1149 = vmatpush1.msra.mxu0 0.0
    %1150 = vmatprep.subr.mxu0 0.0
    %1151 = vmatpush1.msra.mxu0 0.0
    %1152 = vmatprep.subr.mxu0 0.0
    %1153 = vmatpush1.msra.mxu0 0.0
    %1154 = vmatprep.subr.mxu0 0.0
    %1155 = vmatpush1.msra.mxu0 0.0
    %1156 = vmatprep.subr.mxu0 0.0
    %1157 = vmatpush1.msra.mxu0 0.0
    %1158 = vmatprep.subr.mxu0 0.0
    %1159 = vmatpush1.msra.mxu0 0.0
    %1160 = vmatprep.subr.mxu0 0.0
    %1161 = vmatpush1.msra.mxu0 0.0
    %1162 = vmatprep.subr.mxu0 0.0
    %1163 = vmatpush1.msra.mxu0 0.0
    %1164 = vmatprep.subr.mxu0 0.0
    %1165 = vmatpush1.msra.mxu0 0.0
    %1166 = vmatprep.subr.mxu0 0.0
    %1167 = vmatpush1.msra.mxu0 0.0
    %1168 = vmatprep.mubr.f32.mxu0 0.0
    %1169 = vmatmul.mubr.f32.gmra.mrb[0].mxu0 %v1099
    %v1170 = vpop.f32.mrb[0].mxu0
    %v1171 = vadd.f32 %v1090, %v1170
    %v1172 = vpop.f32.mrb[0].mxu0
    %1173 = vmatprep.mubr.f32.mxu0 0.0
    %1174 = vmatmul.mubr.f32.gmra.mrb[0].mxu0 %v1102
    %v1175 = vpop.f32.mrb[0].mxu0
    %v1176 = vadd.f32 %v1095, %v1175
    %v1177 = vpop.f32.mrb[0].mxu0
    %1178 = vdwg.mxu0
    %s1179 = scalar_lea.vmem %s8, 32
    %v1180 = vld [vmem:[%s1179] sm:$0xff]
    %v1181 = vld [vmem:[%s1179 + $0x8] sm:$0xff]
    %1182 = vrot.lane.b32.xlu0 %v978, 126
    %v1183 = vpop.permute.xlu0 %1182
    %1184 = vrot.lane.b32.xlu0 %v979, 126
    %v1185 = vpop.permute.xlu0 %1184
    %v1189 = vsel %vm249, %v1180, 0
    %v1192 = vsel %vm249, %v1181, 0
    %1194 = vmatprep.subr.mxu0 0.0
    %1195 = vmatpush1.msra.mxu0 %v1183
    %1196 = vmatprep.subr.mxu0 0.0
    %1197 = vmatpush1.msra.mxu0 %v1185
    %1198 = vmatprep.subr.mxu0 0.0
    %1199 = vmatpush1.msra.mxu0 0.0
    %1200 = vmatprep.subr.mxu0 0.0
    %1201 = vmatpush1.msra.mxu0 0.0
    %1202 = vmatprep.subr.mxu0 0.0
    %1203 = vmatpush1.msra.mxu0 0.0
    %1204 = vmatprep.subr.mxu0 0.0
    %1205 = vmatpush1.msra.mxu0 0.0
    %1206 = vmatprep.subr.mxu0 0.0
    %1207 = vmatpush1.msra.mxu0 0.0
    %1208 = vmatprep.subr.mxu0 0.0
    %1209 = vmatpush1.msra.mxu0 0.0
    %1210 = vmatprep.subr.mxu0 0.0
    %1211 = vmatpush1.msra.mxu0 0.0
    %1212 = vmatprep.subr.mxu0 0.0
    %1213 = vmatpush1.msra.mxu0 0.0
    %1214 = vmatprep.subr.mxu0 0.0
    %1215 = vmatpush1.msra.mxu0 0.0
    %1216 = vmatprep.subr.mxu0 0.0
    %1217 = vmatpush1.msra.mxu0 0.0
    %1218 = vmatprep.subr.mxu0 0.0
    %1219 = vmatpush1.msra.mxu0 0.0
    %1220 = vmatprep.subr.mxu0 0.0
    %1221 = vmatpush1.msra.mxu0 0.0
    %1222 = vmatprep.subr.mxu0 0.0
    %1223 = vmatpush1.msra.mxu0 0.0
    %1224 = vmatprep.subr.mxu0 0.0
    %1225 = vmatpush1.msra.mxu0 0.0
    %1226 = vmatprep.subr.mxu0 0.0
    %1227 = vmatpush1.msra.mxu0 0.0
    %1228 = vmatprep.subr.mxu0 0.0
    %1229 = vmatpush1.msra.mxu0 0.0
    %1230 = vmatprep.subr.mxu0 0.0
    %1231 = vmatpush1.msra.mxu0 0.0
    %1232 = vmatprep.subr.mxu0 0.0
    %1233 = vmatpush1.msra.mxu0 0.0
    %1234 = vmatprep.subr.mxu0 0.0
    %1235 = vmatpush1.msra.mxu0 0.0
    %1236 = vmatprep.subr.mxu0 0.0
    %1237 = vmatpush1.msra.mxu0 0.0
    %1238 = vmatprep.subr.mxu0 0.0
    %1239 = vmatpush1.msra.mxu0 0.0
    %1240 = vmatprep.subr.mxu0 0.0
    %1241 = vmatpush1.msra.mxu0 0.0
    %1242 = vmatprep.subr.mxu0 0.0
    %1243 = vmatpush1.msra.mxu0 0.0
    %1244 = vmatprep.subr.mxu0 0.0
    %1245 = vmatpush1.msra.mxu0 0.0
    %1246 = vmatprep.subr.mxu0 0.0
    %1247 = vmatpush1.msra.mxu0 0.0
    %1248 = vmatprep.subr.mxu0 0.0
    %1249 = vmatpush1.msra.mxu0 0.0
    %1250 = vmatprep.subr.mxu0 0.0
    %1251 = vmatpush1.msra.mxu0 0.0
    %1252 = vmatprep.subr.mxu0 0.0
    %1253 = vmatpush1.msra.mxu0 0.0
    %1254 = vmatprep.subr.mxu0 0.0
    %1255 = vmatpush1.msra.mxu0 0.0
    %1256 = vmatprep.subr.mxu0 0.0
    %1257 = vmatpush1.msra.mxu0 0.0
    %1258 = vmatprep.mubr.f32.mxu0 0.0
    %1259 = vmatmul.mubr.f32.gmra.mrb[0].mxu0 %v1189
    %v1260 = vpop.f32.mrb[0].mxu0
    %v1261 = vadd.f32 0.0, %v1260
    %v1262 = vpop.f32.mrb[0].mxu0
    %1263 = vmatprep.mubr.f32.mxu0 0.0
    %1264 = vmatmul.mubr.f32.gmra.mrb[0].mxu0 %v1192
    %v1265 = vpop.f32.mrb[0].mxu0
    %v1266 = vadd.f32 0.0, %v1265
    %v1267 = vpop.f32.mrb[0].mxu0
    %1268 = vdwg.mxu0
    %v1269 = vadd.f32 %v1171, %v1261
    %v1270 = vadd.f32 %v1176, %v1266
    %v1271 = vadd.s32 %v55, 1
    %vm1272 = vcmp.ge.s32.totalorder %v1271, 0
    %vm1273 = vcmp.lt.s32.totalorder %v1271, 16
    %vm1274 = vmand %vm1272, %vm1273
    %v1275 = vsel %vm1274, 1, 0
    %v1276 = vlaneseq
    %v1277 = vshrl.u32 %v1276, 7
    %v1278 = vsub.s32 0, %v1277
    %v1279 = vrot.slane %v1275, %v1278
    %vm1280 = vcmp.eq.s32.totalorder %v1279, 1
    %1281 = vrot.lane.b32.xlu0 %v978, 125
    %v1282 = vpop.permute.xlu0 %1281
    %1283 = vrot.lane.b32.xlu0 %v979, 125
    %v1284 = vpop.permute.xlu0 %1283
    %v1287 = vsel %vm1280, %v1282, 0.0
    %v1288 = vsel %vm1280, %v1284, 0.0
    %s1289 = scalar_lea.vmem %s8, 48
    %v1290 = vld [vmem:[%s1289] sm:$0xff]
    %v1291 = vld [vmem:[%s1289 + $0x8] sm:$0xff]
    %v1293 = vsel %vm249, %v1290, 0
    %v1296 = vsel %vm249, %v1291, 0
    %1298 = vmatprep.subr.mxu0 0.0
    %1299 = vmatpush1.msra.mxu0 %v1287
    %1300 = vmatprep.subr.mxu0 0.0
    %1301 = vmatpush1.msra.mxu0 %v1288
    %1302 = vmatprep.subr.mxu0 0.0
    %1303 = vmatpush1.msra.mxu0 0.0
    %1304 = vmatprep.subr.mxu0 0.0
    %1305 = vmatpush1.msra.mxu0 0.0
    %1306 = vmatprep.subr.mxu0 0.0
    %1307 = vmatpush1.msra.mxu0 0.0
    %1308 = vmatprep.subr.mxu0 0.0
    %1309 = vmatpush1.msra.mxu0 0.0
    %1310 = vmatprep.subr.mxu0 0.0
    %1311 = vmatpush1.msra.mxu0 0.0
    %1312 = vmatprep.subr.mxu0 0.0
    %1313 = vmatpush1.msra.mxu0 0.0
    %1314 = vmatprep.subr.mxu0 0.0
    %1315 = vmatpush1.msra.mxu0 0.0
    %1316 = vmatprep.subr.mxu0 0.0
    %1317 = vmatpush1.msra.mxu0 0.0
    %1318 = vmatprep.subr.mxu0 0.0
    %1319 = vmatpush1.msra.mxu0 0.0
    %1320 = vmatprep.subr.mxu0 0.0
    %1321 = vmatpush1.msra.mxu0 0.0
    %1322 = vmatprep.subr.mxu0 0.0
    %1323 = vmatpush1.msra.mxu0 0.0
    %1324 = vmatprep.subr.mxu0 0.0
    %1325 = vmatpush1.msra.mxu0 0.0
    %1326 = vmatprep.subr.mxu0 0.0
    %1327 = vmatpush1.msra.mxu0 0.0
    %1328 = vmatprep.subr.mxu0 0.0
    %1329 = vmatpush1.msra.mxu0 0.0
    %1330 = vmatprep.subr.mxu0 0.0
    %1331 = vmatpush1.msra.mxu0 0.0
    %1332 = vmatprep.subr.mxu0 0.0
    %1333 = vmatpush1.msra.mxu0 0.0
    %1334 = vmatprep.subr.mxu0 0.0
    %1335 = vmatpush1.msra.mxu0 0.0
    %1336 = vmatprep.subr.mxu0 0.0
    %1337 = vmatpush1.msra.mxu0 0.0
    %1338 = vmatprep.subr.mxu0 0.0
    %1339 = vmatpush1.msra.mxu0 0.0
    %1340 = vmatprep.subr.mxu0 0.0
    %1341 = vmatpush1.msra.mxu0 0.0
    %1342 = vmatprep.subr.mxu0 0.0
    %1343 = vmatpush1.msra.mxu0 0.0
    %1344 = vmatprep.subr.mxu0 0.0
    %1345 = vmatpush1.msra.mxu0 0.0
    %1346 = vmatprep.subr.mxu0 0.0
    %1347 = vmatpush1.msra.mxu0 0.0
    %1348 = vmatprep.subr.mxu0 0.0
    %1349 = vmatpush1.msra.mxu0 0.0
    %1350 = vmatprep.subr.mxu0 0.0
    %1351 = vmatpush1.msra.mxu0 0.0
    %1352 = vmatprep.subr.mxu0 0.0
    %1353 = vmatpush1.msra.mxu0 0.0
    %1354 = vmatprep.subr.mxu0 0.0
    %1355 = vmatpush1.msra.mxu0 0.0
    %1356 = vmatprep.subr.mxu0 0.0
    %1357 = vmatpush1.msra.mxu0 0.0
    %1358 = vmatprep.subr.mxu0 0.0
    %1359 = vmatpush1.msra.mxu0 0.0
    %1360 = vmatprep.subr.mxu0 0.0
    %1361 = vmatpush1.msra.mxu0 0.0
    %1362 = vmatprep.mubr.f32.mxu0 0.0
    %1363 = vmatmul.mubr.f32.gmra.mrb[0].mxu0 %v1293
    %v1364 = vpop.f32.mrb[0].mxu0
    %v1365 = vadd.f32 0.0, %v1364
    %v1366 = vpop.f32.mrb[0].mxu0
    %1367 = vmatprep.mubr.f32.mxu0 0.0
    %1368 = vmatmul.mubr.f32.gmra.mrb[0].mxu0 %v1296
    %v1369 = vpop.f32.mrb[0].mxu0
    %v1370 = vadd.f32 0.0, %v1369
    %v1371 = vpop.f32.mrb[0].mxu0
    %1372 = vdwg.mxu0
    %v1373 = vadd.f32 %v1269, %v1365
    %v1374 = vadd.f32 %v1270, %v1370
    %v1375 = vadd.s32 %v55, 2
    %vm1376 = vcmp.ge.s32.totalorder %v1375, 0
    %vm1377 = vcmp.lt.s32.totalorder %v1375, 16
    %vm1378 = vmand %vm1376, %vm1377
    %v1379 = vsel %vm1378, 1, 0
    %v1380 = vlaneseq
    %v1381 = vshrl.u32 %v1380, 7
    %v1382 = vsub.s32 0, %v1381
    %v1383 = vrot.slane %v1379, %v1382
    %vm1384 = vcmp.eq.s32.totalorder %v1383, 1
    %1385 = vrot.lane.b32.xlu0 %v978, 124
    %v1386 = vpop.permute.xlu0 %1385
    %1387 = vrot.lane.b32.xlu0 %v979, 124
    %v1388 = vpop.permute.xlu0 %1387
    %v1391 = vsel %vm1384, %v1386, 0.0
    %v1392 = vsel %vm1384, %v1388, 0.0
    %s1393 = scalar_lea.vmem %s8, 64
    %v1394 = vld [vmem:[%s1393] sm:$0xff]
    %v1395 = vld [vmem:[%s1393 + $0x8] sm:$0xff]
    %v1397 = vsel %vm249, %v1394, 0
    %v1400 = vsel %vm249, %v1395, 0
    %1402 = vmatprep.subr.mxu0 0.0
    %1403 = vmatpush1.msra.mxu0 %v1391
    %1404 = vmatprep.subr.mxu0 0.0
    %1405 = vmatpush1.msra.mxu0 %v1392
    %1406 = vmatprep.subr.mxu0 0.0
    %1407 = vmatpush1.msra.mxu0 0.0
    %1408 = vmatprep.subr.mxu0 0.0
    %1409 = vmatpush1.msra.mxu0 0.0
    %1410 = vmatprep.subr.mxu0 0.0
    %1411 = vmatpush1.msra.mxu0 0.0
    %1412 = vmatprep.subr.mxu0 0.0
    %1413 = vmatpush1.msra.mxu0 0.0
    %1414 = vmatprep.subr.mxu0 0.0
    %1415 = vmatpush1.msra.mxu0 0.0
    %1416 = vmatprep.subr.mxu0 0.0
    %1417 = vmatpush1.msra.mxu0 0.0
    %1418 = vmatprep.subr.mxu0 0.0
    %1419 = vmatpush1.msra.mxu0 0.0
    %1420 = vmatprep.subr.mxu0 0.0
    %1421 = vmatpush1.msra.mxu0 0.0
    %1422 = vmatprep.subr.mxu0 0.0
    %1423 = vmatpush1.msra.mxu0 0.0
    %1424 = vmatprep.subr.mxu0 0.0
    %1425 = vmatpush1.msra.mxu0 0.0
    %1426 = vmatprep.subr.mxu0 0.0
    %1427 = vmatpush1.msra.mxu0 0.0
    %1428 = vmatprep.subr.mxu0 0.0
    %1429 = vmatpush1.msra.mxu0 0.0
    %1430 = vmatprep.subr.mxu0 0.0
    %1431 = vmatpush1.msra.mxu0 0.0
    %1432 = vmatprep.subr.mxu0 0.0
    %1433 = vmatpush1.msra.mxu0 0.0
    %1434 = vmatprep.subr.mxu0 0.0
    %1435 = vmatpush1.msra.mxu0 0.0
    %1436 = vmatprep.subr.mxu0 0.0
    %1437 = vmatpush1.msra.mxu0 0.0
    %1438 = vmatprep.subr.mxu0 0.0
    %1439 = vmatpush1.msra.mxu0 0.0
    %1440 = vmatprep.subr.mxu0 0.0
    %1441 = vmatpush1.msra.mxu0 0.0
    %1442 = vmatprep.subr.mxu0 0.0
    %1443 = vmatpush1.msra.mxu0 0.0
    %1444 = vmatprep.subr.mxu0 0.0
    %1445 = vmatpush1.msra.mxu0 0.0
    %1446 = vmatprep.subr.mxu0 0.0
    %1447 = vmatpush1.msra.mxu0 0.0
    %1448 = vmatprep.subr.mxu0 0.0
    %1449 = vmatpush1.msra.mxu0 0.0
    %1450 = vmatprep.subr.mxu0 0.0
    %1451 = vmatpush1.msra.mxu0 0.0
    %1452 = vmatprep.subr.mxu0 0.0
    %1453 = vmatpush1.msra.mxu0 0.0
    %1454 = vmatprep.subr.mxu0 0.0
    %1455 = vmatpush1.msra.mxu0 0.0
    %1456 = vmatprep.subr.mxu0 0.0
    %1457 = vmatpush1.msra.mxu0 0.0
    %1458 = vmatprep.subr.mxu0 0.0
    %1459 = vmatpush1.msra.mxu0 0.0
    %1460 = vmatprep.subr.mxu0 0.0
    %1461 = vmatpush1.msra.mxu0 0.0
    %1462 = vmatprep.subr.mxu0 0.0
    %1463 = vmatpush1.msra.mxu0 0.0
    %1464 = vmatprep.subr.mxu0 0.0
    %1465 = vmatpush1.msra.mxu0 0.0
    %1466 = vmatprep.mubr.f32.mxu0 0.0
    %1467 = vmatmul.mubr.f32.gmra.mrb[0].mxu0 %v1397
    %v1468 = vpop.f32.mrb[0].mxu0
    %v1469 = vadd.f32 0.0, %v1468
    %v1470 = vpop.f32.mrb[0].mxu0
    %1471 = vmatprep.mubr.f32.mxu0 0.0
    %1472 = vmatmul.mubr.f32.gmra.mrb[0].mxu0 %v1400
    %v1473 = vpop.f32.mrb[0].mxu0
    %v1474 = vadd.f32 0.0, %v1473
    %v1475 = vpop.f32.mrb[0].mxu0
    %1476 = vdwg.mxu0
    %v1477 = vadd.f32 %v1373, %v1469
    %v1478 = vadd.f32 %v1374, %v1474
    %v1479 = vld [vmem:[%s9] sm:$0xff]
    %v1480 = vld [vmem:[%s9 + $0x8] sm:$0xff]
    %1482 = vset.pattern.permute.xlu0 0
    %1483 = vperm.xlu0 %1482, %v1479
    %v1484 = vpop.permute.xlu0 %1483
    %1487 = vset.pattern.permute.xlu0 0
    %1488 = vperm.xlu0 %1487, %v1480
    %v1489 = vpop.permute.xlu0 %1488
    %v1491 = vadd.f32 %v1477, %v1484
    %v1492 = vadd.f32 %v1478, %v1489
    %v1493 = vld [vmem:[%s10] sm:$0xff]
    %v1494 = vld [vmem:[%s10 + $0x8] sm:$0xff]
    %v1495 = vld [vmem:[%s11] sm:$0xff]
    %v1496 = vld [vmem:[%s11 + $0x8] sm:$0xff]
    %v1498 = vsel %vm163, %v1491, 0
    %v1501 = vsel %vm163, %v1492, 0
    %1503 = vmatprep.subr.mxu0 0.0
    %1504 = vmatpush1.xpose.msra.mxu0 %v171
    %1505 = vmatprep.subr.mxu0 0.0
    %1506 = vmatpush1.xpose.msra.mxu0 0.0
    %1507 = vmatprep.subr.mxu0 0.0
    %1508 = vmatpush1.xpose.msra.mxu0 0.0
    %1509 = vmatprep.subr.mxu0 0.0
    %1510 = vmatpush1.xpose.msra.mxu0 0.0
    %1511 = vmatprep.subr.mxu0 0.0
    %1512 = vmatpush1.xpose.msra.mxu0 0.0
    %1513 = vmatprep.subr.mxu0 0.0
    %1514 = vmatpush1.xpose.msra.mxu0 0.0
    %1515 = vmatprep.subr.mxu0 0.0
    %1516 = vmatpush1.xpose.msra.mxu0 0.0
    %1517 = vmatprep.subr.mxu0 0.0
    %1518 = vmatpush1.xpose.msra.mxu0 0.0
    %1519 = vmatprep.subr.mxu0 0.0
    %1520 = vmatpush1.xpose.msra.mxu0 0.0
    %1521 = vmatprep.subr.mxu0 0.0
    %1522 = vmatpush1.xpose.msra.mxu0 0.0
    %1523 = vmatprep.subr.mxu0 0.0
    %1524 = vmatpush1.xpose.msra.mxu0 0.0
    %1525 = vmatprep.subr.mxu0 0.0
    %1526 = vmatpush1.xpose.msra.mxu0 0.0
    %1527 = vmatprep.subr.mxu0 0.0
    %1528 = vmatpush1.xpose.msra.mxu0 0.0
    %1529 = vmatprep.subr.mxu0 0.0
    %1530 = vmatpush1.xpose.msra.mxu0 0.0
    %1531 = vmatprep.subr.mxu0 0.0
    %1532 = vmatpush1.xpose.msra.mxu0 0.0
    %1533 = vmatprep.subr.mxu0 0.0
    %1534 = vmatpush1.xpose.msra.mxu0 0.0
    %1535 = vmatprep.subr.mxu0 0.0
    %1536 = vmatpush1.xpose.msra.mxu0 0.0
    %1537 = vmatprep.subr.mxu0 0.0
    %1538 = vmatpush1.xpose.msra.mxu0 0.0
    %1539 = vmatprep.subr.mxu0 0.0
    %1540 = vmatpush1.xpose.msra.mxu0 0.0
    %1541 = vmatprep.subr.mxu0 0.0
    %1542 = vmatpush1.xpose.msra.mxu0 0.0
    %1543 = vmatprep.subr.mxu0 0.0
    %1544 = vmatpush1.xpose.msra.mxu0 0.0
    %1545 = vmatprep.subr.mxu0 0.0
    %1546 = vmatpush1.xpose.msra.mxu0 0.0
    %1547 = vmatprep.subr.mxu0 0.0
    %1548 = vmatpush1.xpose.msra.mxu0 0.0
    %1549 = vmatprep.subr.mxu0 0.0
    %1550 = vmatpush1.xpose.msra.mxu0 0.0
    %1551 = vmatprep.subr.mxu0 0.0
    %1552 = vmatpush1.xpose.msra.mxu0 0.0
    %1553 = vmatprep.subr.mxu0 0.0
    %1554 = vmatpush1.xpose.msra.mxu0 0.0
    %1555 = vmatprep.subr.mxu0 0.0
    %1556 = vmatpush1.xpose.msra.mxu0 0.0
    %1557 = vmatprep.subr.mxu0 0.0
    %1558 = vmatpush1.xpose.msra.mxu0 0.0
    %1559 = vmatprep.subr.mxu0 0.0
    %1560 = vmatpush1.xpose.msra.mxu0 0.0
    %1561 = vmatprep.subr.mxu0 0.0
    %1562 = vmatpush1.xpose.msra.mxu0 0.0
    %1563 = vmatprep.subr.mxu0 0.0
    %1564 = vmatpush1.xpose.msra.mxu0 0.0
    %1565 = vmatprep.subr.mxu0 0.0
    %1566 = vmatpush1.xpose.msra.mxu0 0.0
    %1567 = vmatprep.mubr.f32.mxu0 0.0
    %1568 = vmatmul.mubr.f32.gmra.mrb[0].mxu0 %v1498
    %v1569 = vpop.f32.mrb[0].mxu0
    %v1570 = vadd.f32 0.0, %v1569
    %v1571 = vpop.f32.mrb[0].mxu0
    %1572 = vmatprep.mubr.f32.mxu0 0.0
    %1573 = vmatmul.mubr.f32.gmra.mrb[0].mxu0 %v1501
    %v1574 = vpop.f32.mrb[0].mxu0
    %v1575 = vadd.f32 0.0, %v1574
    %v1576 = vpop.f32.mrb[0].mxu0
    %1577 = vdwg.mxu0
    %v1578 = vld [vmem:[%s12] sm:$0xff]
    %v1580 = vsel %vm249, %v1578, 0
    %1582 = vmatprep.subr.mxu0 0.0
    %1583 = vmatpush1.msra.mxu0 %v1570
    %1584 = vmatprep.subr.mxu0 0.0
    %1585 = vmatpush1.msra.mxu0 %v1575
    %1586 = vmatprep.subr.mxu0 0.0
    %1587 = vmatpush1.msra.mxu0 0.0
    %1588 = vmatprep.subr.mxu0 0.0
    %1589 = vmatpush1.msra.mxu0 0.0
    %1590 = vmatprep.subr.mxu0 0.0
    %1591 = vmatpush1.msra.mxu0 0.0
    %1592 = vmatprep.subr.mxu0 0.0
    %1593 = vmatpush1.msra.mxu0 0.0
    %1594 = vmatprep.subr.mxu0 0.0
    %1595 = vmatpush1.msra.mxu0 0.0
    %1596 = vmatprep.subr.mxu0 0.0
    %1597 = vmatpush1.msra.mxu0 0.0
    %1598 = vmatprep.subr.mxu0 0.0
    %1599 = vmatpush1.msra.mxu0 0.0
    %1600 = vmatprep.subr.mxu0 0.0
    %1601 = vmatpush1.msra.mxu0 0.0
    %1602 = vmatprep.subr.mxu0 0.0
    %1603 = vmatpush1.msra.mxu0 0.0
    %1604 = vmatprep.subr.mxu0 0.0
    %1605 = vmatpush1.msra.mxu0 0.0
    %1606 = vmatprep.subr.mxu0 0.0
    %1607 = vmatpush1.msra.mxu0 0.0
    %1608 = vmatprep.subr.mxu0 0.0
    %1609 = vmatpush1.msra.mxu0 0.0
    %1610 = vmatprep.subr.mxu0 0.0
    %1611 = vmatpush1.msra.mxu0 0.0
    %1612 = vmatprep.subr.mxu0 0.0
    %1613 = vmatpush1.msra.mxu0 0.0
    %1614 = vmatprep.subr.mxu0 0.0
    %1615 = vmatpush1.msra.mxu0 0.0
    %1616 = vmatprep.subr.mxu0 0.0
    %1617 = vmatpush1.msra.mxu0 0.0
    %1618 = vmatprep.subr.mxu0 0.0
    %1619 = vmatpush1.msra.mxu0 0.0
    %1620 = vmatprep.subr.mxu0 0.0
    %1621 = vmatpush1.msra.mxu0 0.0
    %1622 = vmatprep.subr.mxu0 0.0
    %1623 = vmatpush1.msra.mxu0 0.0
    %1624 = vmatprep.subr.mxu0 0.0
    %1625 = vmatpush1.msra.mxu0 0.0
    %1626 = vmatprep.subr.mxu0 0.0
    %1627 = vmatpush1.msra.mxu0 0.0
    %1628 = vmatprep.subr.mxu0 0.0
    %1629 = vmatpush1.msra.mxu0 0.0
    %1630 = vmatprep.subr.mxu0 0.0
    %1631 = vmatpush1.msra.mxu0 0.0
    %1632 = vmatprep.subr.mxu0 0.0
    %1633 = vmatpush1.msra.mxu0 0.0
    %1634 = vmatprep.subr.mxu0 0.0
    %1635 = vmatpush1.msra.mxu0 0.0
    %1636 = vmatprep.subr.mxu0 0.0
    %1637 = vmatpush1.msra.mxu0 0.0
    %1638 = vmatprep.subr.mxu0 0.0
    %1639 = vmatpush1.msra.mxu0 0.0
    %1640 = vmatprep.subr.mxu0 0.0
    %1641 = vmatpush1.msra.mxu0 0.0
    %1642 = vmatprep.subr.mxu0 0.0
    %1643 = vmatpush1.msra.mxu0 0.0
    %1644 = vmatprep.subr.mxu0 0.0
    %1645 = vmatpush1.msra.mxu0 0.0
    %1646 = vmatprep.mubr.f32.mxu0 0.0
    %1647 = vmatmul.mubr.f32.gmra.mrb[0].mxu0 %v1580
    %v1648 = vpop.f32.mrb[0].mxu0
    %v1649 = vadd.f32 0.0, %v1648
    %v1650 = vpop.f32.mrb[0].mxu0
    %1651 = vdwg.mxu0
    %v1652 = vmul.f32 %v1649, 0.03125
    %v1653 = vld [vmem:[%s13] sm:$0xff]
    %v1654 = vld [vmem:[%s13 + $0x8] sm:$0xff]
    %v1656 = vsel %vm326, %v1653, 0
    %v1659 = vsel %vm326, %v1654, 0
    %1661 = vmatprep.subr.mxu0 0.0
    %1662 = vmatpush1.msra.mxu0 %v1652
    %1663 = vmatprep.subr.mxu0 0.0
    %1664 = vmatpush1.msra.mxu0 0.0
    %1665 = vmatprep.subr.mxu0 0.0
    %1666 = vmatpush1.msra.mxu0 0.0
    %1667 = vmatprep.subr.mxu0 0.0
    %1668 = vmatpush1.msra.mxu0 0.0
    %1669 = vmatprep.subr.mxu0 0.0
    %1670 = vmatpush1.msra.mxu0 0.0
    %1671 = vmatprep.subr.mxu0 0.0
    %1672 = vmatpush1.msra.mxu0 0.0
    %1673 = vmatprep.subr.mxu0 0.0
    %1674 = vmatpush1.msra.mxu0 0.0
    %1675 = vmatprep.subr.mxu0 0.0
    %1676 = vmatpush1.msra.mxu0 0.0
    %1677 = vmatprep.subr.mxu0 0.0
    %1678 = vmatpush1.msra.mxu0 0.0
    %1679 = vmatprep.subr.mxu0 0.0
    %1680 = vmatpush1.msra.mxu0 0.0
    %1681 = vmatprep.subr.mxu0 0.0
    %1682 = vmatpush1.msra.mxu0 0.0
    %1683 = vmatprep.subr.mxu0 0.0
    %1684 = vmatpush1.msra.mxu0 0.0
    %1685 = vmatprep.subr.mxu0 0.0
    %1686 = vmatpush1.msra.mxu0 0.0
    %1687 = vmatprep.subr.mxu0 0.0
    %1688 = vmatpush1.msra.mxu0 0.0
    %1689 = vmatprep.subr.mxu0 0.0
    %1690 = vmatpush1.msra.mxu0 0.0
    %1691 = vmatprep.subr.mxu0 0.0
    %1692 = vmatpush1.msra.mxu0 0.0
    %1693 = vmatprep.subr.mxu0 0.0
    %1694 = vmatpush1.msra.mxu0 0.0
    %1695 = vmatprep.subr.mxu0 0.0
    %1696 = vmatpush1.msra.mxu0 0.0
    %1697 = vmatprep.subr.mxu0 0.0
    %1698 = vmatpush1.msra.mxu0 0.0
    %1699 = vmatprep.subr.mxu0 0.0
    %1700 = vmatpush1.msra.mxu0 0.0
    %1701 = vmatprep.subr.mxu0 0.0
    %1702 = vmatpush1.msra.mxu0 0.0
    %1703 = vmatprep.subr.mxu0 0.0
    %1704 = vmatpush1.msra.mxu0 0.0
    %1705 = vmatprep.subr.mxu0 0.0
    %1706 = vmatpush1.msra.mxu0 0.0
    %1707 = vmatprep.subr.mxu0 0.0
    %1708 = vmatpush1.msra.mxu0 0.0
    %1709 = vmatprep.subr.mxu0 0.0
    %1710 = vmatpush1.msra.mxu0 0.0
    %1711 = vmatprep.subr.mxu0 0.0
    %1712 = vmatpush1.msra.mxu0 0.0
    %1713 = vmatprep.subr.mxu0 0.0
    %1714 = vmatpush1.msra.mxu0 0.0
    %1715 = vmatprep.subr.mxu0 0.0
    %1716 = vmatpush1.msra.mxu0 0.0
    %1717 = vmatprep.subr.mxu0 0.0
    %1718 = vmatpush1.msra.mxu0 0.0
    %1719 = vmatprep.subr.mxu0 0.0
    %1720 = vmatpush1.msra.mxu0 0.0
    %1721 = vmatprep.subr.mxu0 0.0
    %1722 = vmatpush1.msra.mxu0 0.0
    %1723 = vmatprep.subr.mxu0 0.0
    %1724 = vmatpush1.msra.mxu0 0.0
    %1725 = vmatprep.mubr.f32.mxu0 0.0
    %1726 = vmatmul.mubr.f32.gmra.mrb[0].mxu0 %v1656
    %v1727 = vpop.f32.mrb[0].mxu0
    %v1728 = vadd.f32 0.0, %v1727
    %v1729 = vpop.f32.mrb[0].mxu0
    %1730 = vmatprep.mubr.f32.mxu0 0.0
    %1731 = vmatmul.mubr.f32.gmra.mrb[0].mxu0 %v1659
    %v1732 = vpop.f32.mrb[0].mxu0
    %v1733 = vadd.f32 0.0, %v1732
    %v1734 = vpop.f32.mrb[0].mxu0
    %1735 = vdwg.mxu0
    %v1737 = vsel %vm408, %v1728, 0
    %v1740 = vsel %vm408, %v1733, 0
    %1742 = vmatprep.subr.mxu0 0.0
    %1743 = vmatpush1.msra.mxu0 %v416
    %1744 = vmatprep.subr.mxu0 0.0
    %1745 = vmatpush1.msra.mxu0 0.0
    %1746 = vmatprep.subr.mxu0 0.0
    %1747 = vmatpush1.msra.mxu0 0.0
    %1748 = vmatprep.subr.mxu0 0.0
    %1749 = vmatpush1.msra.mxu0 0.0
    %1750 = vmatprep.subr.mxu0 0.0
    %1751 = vmatpush1.msra.mxu0 0.0
    %1752 = vmatprep.subr.mxu0 0.0
    %1753 = vmatpush1.msra.mxu0 0.0
    %1754 = vmatprep.subr.mxu0 0.0
    %1755 = vmatpush1.msra.mxu0 0.0
    %1756 = vmatprep.subr.mxu0 0.0
    %1757 = vmatpush1.msra.mxu0 0.0
    %1758 = vmatprep.subr.mxu0 0.0
    %1759 = vmatpush1.msra.mxu0 0.0
    %1760 = vmatprep.subr.mxu0 0.0
    %1761 = vmatpush1.msra.mxu0 0.0
    %1762 = vmatprep.subr.mxu0 0.0
    %1763 = vmatpush1.msra.mxu0 0.0
    %1764 = vmatprep.subr.mxu0 0.0
    %1765 = vmatpush1.msra.mxu0 0.0
    %1766 = vmatprep.subr.mxu0 0.0
    %1767 = vmatpush1.msra.mxu0 0.0
    %1768 = vmatprep.subr.mxu0 0.0
    %1769 = vmatpush1.msra.mxu0 0.0
    %1770 = vmatprep.subr.mxu0 0.0
    %1771 = vmatpush1.msra.mxu0 0.0
    %1772 = vmatprep.subr.mxu0 0.0
    %1773 = vmatpush1.msra.mxu0 0.0
    %1774 = vmatprep.subr.mxu0 0.0
    %1775 = vmatpush1.msra.mxu0 0.0
    %1776 = vmatprep.subr.mxu0 0.0
    %1777 = vmatpush1.msra.mxu0 0.0
    %1778 = vmatprep.subr.mxu0 0.0
    %1779 = vmatpush1.msra.mxu0 0.0
    %1780 = vmatprep.subr.mxu0 0.0
    %1781 = vmatpush1.msra.mxu0 0.0
    %1782 = vmatprep.subr.mxu0 0.0
    %1783 = vmatpush1.msra.mxu0 0.0
    %1784 = vmatprep.subr.mxu0 0.0
    %1785 = vmatpush1.msra.mxu0 0.0
    %1786 = vmatprep.subr.mxu0 0.0
    %1787 = vmatpush1.msra.mxu0 0.0
    %1788 = vmatprep.subr.mxu0 0.0
    %1789 = vmatpush1.msra.mxu0 0.0
    %1790 = vmatprep.subr.mxu0 0.0
    %1791 = vmatpush1.msra.mxu0 0.0
    %1792 = vmatprep.subr.mxu0 0.0
    %1793 = vmatpush1.msra.mxu0 0.0
    %1794 = vmatprep.subr.mxu0 0.0
    %1795 = vmatpush1.msra.mxu0 0.0
    %1796 = vmatprep.subr.mxu0 0.0
    %1797 = vmatpush1.msra.mxu0 0.0
    %1798 = vmatprep.subr.mxu0 0.0
    %1799 = vmatpush1.msra.mxu0 0.0
    %1800 = vmatprep.subr.mxu0 0.0
    %1801 = vmatpush1.msra.mxu0 0.0
    %1802 = vmatprep.subr.mxu0 0.0
    %1803 = vmatpush1.msra.mxu0 0.0
    %1804 = vmatprep.subr.mxu0 0.0
    %1805 = vmatpush1.msra.mxu0 0.0
    %1806 = vmatprep.mubr.f32.mxu0 0.0
    %1807 = vmatmul.mubr.f32.gmra.mrb[0].mxu0 %v1737
    %v1808 = vpop.f32.mrb[0].mxu0
    %v1809 = vadd.f32 0.0, %v1808
    %v1810 = vpop.f32.mrb[0].mxu0
    %1811 = vmatprep.mubr.f32.mxu0 0.0
    %1812 = vmatmul.mubr.f32.gmra.mrb[0].mxu0 %v1740
    %v1813 = vpop.f32.mrb[0].mxu0
    %v1814 = vadd.f32 0.0, %v1813
    %v1815 = vpop.f32.mrb[0].mxu0
    %1816 = vdwg.mxu0
    %v1817 = vsub.f32 %v1491, %v1809
    %v1818 = vsub.f32 %v1492, %v1814
    %v1819 = vmul.f32 %v1817, %v1817
    %v1820 = vmul.f32 %v1818, %v1818
    %v1822 = vsel %vm163, %v1819, 0
    %v1825 = vsel %vm163, %v1820, 0
    %1827 = vmatprep.subr.mxu0 0.0
    %1828 = vmatpush1.xpose.msra.mxu0 %v171
    %1829 = vmatprep.subr.mxu0 0.0
    %1830 = vmatpush1.xpose.msra.mxu0 0.0
    %1831 = vmatprep.subr.mxu0 0.0
    %1832 = vmatpush1.xpose.msra.mxu0 0.0
    %1833 = vmatprep.subr.mxu0 0.0
    %1834 = vmatpush1.xpose.msra.mxu0 0.0
    %1835 = vmatprep.subr.mxu0 0.0
    %1836 = vmatpush1.xpose.msra.mxu0 0.0
    %1837 = vmatprep.subr.mxu0 0.0
    %1838 = vmatpush1.xpose.msra.mxu0 0.0
    %1839 = vmatprep.subr.mxu0 0.0
    %1840 = vmatpush1.xpose.msra.mxu0 0.0
    %1841 = vmatprep.subr.mxu0 0.0
    %1842 = vmatpush1.xpose.msra.mxu0 0.0
    %1843 = vmatprep.subr.mxu0 0.0
    %1844 = vmatpush1.xpose.msra.mxu0 0.0
    %1845 = vmatprep.subr.mxu0 0.0
    %1846 = vmatpush1.xpose.msra.mxu0 0.0
    %1847 = vmatprep.subr.mxu0 0.0
    %1848 = vmatpush1.xpose.msra.mxu0 0.0
    %1849 = vmatprep.subr.mxu0 0.0
    %1850 = vmatpush1.xpose.msra.mxu0 0.0
    %1851 = vmatprep.subr.mxu0 0.0
    %1852 = vmatpush1.xpose.msra.mxu0 0.0
    %1853 = vmatprep.subr.mxu0 0.0
    %1854 = vmatpush1.xpose.msra.mxu0 0.0
    %1855 = vmatprep.subr.mxu0 0.0
    %1856 = vmatpush1.xpose.msra.mxu0 0.0
    %1857 = vmatprep.subr.mxu0 0.0
    %1858 = vmatpush1.xpose.msra.mxu0 0.0
    %1859 = vmatprep.subr.mxu0 0.0
    %1860 = vmatpush1.xpose.msra.mxu0 0.0
    %1861 = vmatprep.subr.mxu0 0.0
    %1862 = vmatpush1.xpose.msra.mxu0 0.0
    %1863 = vmatprep.subr.mxu0 0.0
    %1864 = vmatpush1.xpose.msra.mxu0 0.0
    %1865 = vmatprep.subr.mxu0 0.0
    %1866 = vmatpush1.xpose.msra.mxu0 0.0
    %1867 = vmatprep.subr.mxu0 0.0
    %1868 = vmatpush1.xpose.msra.mxu0 0.0
    %1869 = vmatprep.subr.mxu0 0.0
    %1870 = vmatpush1.xpose.msra.mxu0 0.0
    %1871 = vmatprep.subr.mxu0 0.0
    %1872 = vmatpush1.xpose.msra.mxu0 0.0
    %1873 = vmatprep.subr.mxu0 0.0
    %1874 = vmatpush1.xpose.msra.mxu0 0.0
    %1875 = vmatprep.subr.mxu0 0.0
    %1876 = vmatpush1.xpose.msra.mxu0 0.0
    %1877 = vmatprep.subr.mxu0 0.0
    %1878 = vmatpush1.xpose.msra.mxu0 0.0
    %1879 = vmatprep.subr.mxu0 0.0
    %1880 = vmatpush1.xpose.msra.mxu0 0.0
    %1881 = vmatprep.subr.mxu0 0.0
    %1882 = vmatpush1.xpose.msra.mxu0 0.0
    %1883 = vmatprep.subr.mxu0 0.0
    %1884 = vmatpush1.xpose.msra.mxu0 0.0
    %1885 = vmatprep.subr.mxu0 0.0
    %1886 = vmatpush1.xpose.msra.mxu0 0.0
    %1887 = vmatprep.subr.mxu0 0.0
    %1888 = vmatpush1.xpose.msra.mxu0 0.0
    %1889 = vmatprep.subr.mxu0 0.0
    %1890 = vmatpush1.xpose.msra.mxu0 0.0
    %1891 = vmatprep.mubr.f32.mxu0 0.0
    %1892 = vmatmul.mubr.f32.gmra.mrb[0].mxu0 %v1822
    %v1893 = vpop.f32.mrb[0].mxu0
    %v1894 = vadd.f32 0.0, %v1893
    %v1895 = vpop.f32.mrb[0].mxu0
    %1896 = vmatprep.mubr.f32.mxu0 0.0
    %1897 = vmatmul.mubr.f32.gmra.mrb[0].mxu0 %v1825
    %v1898 = vpop.f32.mrb[0].mxu0
    %v1899 = vadd.f32 0.0, %v1898
    %v1900 = vpop.f32.mrb[0].mxu0
    %1901 = vdwg.mxu0
    %1902 = vmatprep.subr.mxu0 0.0
    %1903 = vmatpush1.msra.mxu0 %v1894
    %1904 = vmatprep.subr.mxu0 0.0
    %1905 = vmatpush1.msra.mxu0 %v1899
    %1906 = vmatprep.subr.mxu0 0.0
    %1907 = vmatpush1.msra.mxu0 0.0
    %1908 = vmatprep.subr.mxu0 0.0
    %1909 = vmatpush1.msra.mxu0 0.0
    %1910 = vmatprep.subr.mxu0 0.0
    %1911 = vmatpush1.msra.mxu0 0.0
    %1912 = vmatprep.subr.mxu0 0.0
    %1913 = vmatpush1.msra.mxu0 0.0
    %1914 = vmatprep.subr.mxu0 0.0
    %1915 = vmatpush1.msra.mxu0 0.0
    %1916 = vmatprep.subr.mxu0 0.0
    %1917 = vmatpush1.msra.mxu0 0.0
    %1918 = vmatprep.subr.mxu0 0.0
    %1919 = vmatpush1.msra.mxu0 0.0
    %1920 = vmatprep.subr.mxu0 0.0
    %1921 = vmatpush1.msra.mxu0 0.0
    %1922 = vmatprep.subr.mxu0 0.0
    %1923 = vmatpush1.msra.mxu0 0.0
    %1924 = vmatprep.subr.mxu0 0.0
    %1925 = vmatpush1.msra.mxu0 0.0
    %1926 = vmatprep.subr.mxu0 0.0
    %1927 = vmatpush1.msra.mxu0 0.0
    %1928 = vmatprep.subr.mxu0 0.0
    %1929 = vmatpush1.msra.mxu0 0.0
    %1930 = vmatprep.subr.mxu0 0.0
    %1931 = vmatpush1.msra.mxu0 0.0
    %1932 = vmatprep.subr.mxu0 0.0
    %1933 = vmatpush1.msra.mxu0 0.0
    %1934 = vmatprep.subr.mxu0 0.0
    %1935 = vmatpush1.msra.mxu0 0.0
    %1936 = vmatprep.subr.mxu0 0.0
    %1937 = vmatpush1.msra.mxu0 0.0
    %1938 = vmatprep.subr.mxu0 0.0
    %1939 = vmatpush1.msra.mxu0 0.0
    %1940 = vmatprep.subr.mxu0 0.0
    %1941 = vmatpush1.msra.mxu0 0.0
    %1942 = vmatprep.subr.mxu0 0.0
    %1943 = vmatpush1.msra.mxu0 0.0
    %1944 = vmatprep.subr.mxu0 0.0
    %1945 = vmatpush1.msra.mxu0 0.0
    %1946 = vmatprep.subr.mxu0 0.0
    %1947 = vmatpush1.msra.mxu0 0.0
    %1948 = vmatprep.subr.mxu0 0.0
    %1949 = vmatpush1.msra.mxu0 0.0
    %1950 = vmatprep.subr.mxu0 0.0
    %1951 = vmatpush1.msra.mxu0 0.0
    %1952 = vmatprep.subr.mxu0 0.0
    %1953 = vmatpush1.msra.mxu0 0.0
    %1954 = vmatprep.subr.mxu0 0.0
    %1955 = vmatpush1.msra.mxu0 0.0
    %1956 = vmatprep.subr.mxu0 0.0
    %1957 = vmatpush1.msra.mxu0 0.0
    %1958 = vmatprep.subr.mxu0 0.0
    %1959 = vmatpush1.msra.mxu0 0.0
    %1960 = vmatprep.subr.mxu0 0.0
    %1961 = vmatpush1.msra.mxu0 0.0
    %1962 = vmatprep.subr.mxu0 0.0
    %1963 = vmatpush1.msra.mxu0 0.0
    %1964 = vmatprep.subr.mxu0 0.0
    %1965 = vmatpush1.msra.mxu0 0.0
    %1966 = vmatprep.mubr.f32.mxu0 0.0
    %1967 = vmatmul.mubr.f32.gmra.mrb[0].mxu0 %v1580
    %v1968 = vpop.f32.mrb[0].mxu0
    %v1969 = vadd.f32 0.0, %v1968
    %v1970 = vpop.f32.mrb[0].mxu0
    %1971 = vdwg.mxu0
    %v1972 = vmul.f32 %v1969, 0.03125
    %1973 = vmatprep.subr.mxu0 0.0
    %1974 = vmatpush1.msra.mxu0 %v1972
    %1975 = vmatprep.subr.mxu0 0.0
    %1976 = vmatpush1.msra.mxu0 0.0
    %1977 = vmatprep.subr.mxu0 0.0
    %1978 = vmatpush1.msra.mxu0 0.0
    %1979 = vmatprep.subr.mxu0 0.0
    %1980 = vmatpush1.msra.mxu0 0.0
    %1981 = vmatprep.subr.mxu0 0.0
    %1982 = vmatpush1.msra.mxu0 0.0
    %1983 = vmatprep.subr.mxu0 0.0
    %1984 = vmatpush1.msra.mxu0 0.0
    %1985 = vmatprep.subr.mxu0 0.0
    %1986 = vmatpush1.msra.mxu0 0.0
    %1987 = vmatprep.subr.mxu0 0.0
    %1988 = vmatpush1.msra.mxu0 0.0
    %1989 = vmatprep.subr.mxu0 0.0
    %1990 = vmatpush1.msra.mxu0 0.0
    %1991 = vmatprep.subr.mxu0 0.0
    %1992 = vmatpush1.msra.mxu0 0.0
    %1993 = vmatprep.subr.mxu0 0.0
    %1994 = vmatpush1.msra.mxu0 0.0
    %1995 = vmatprep.subr.mxu0 0.0
    %1996 = vmatpush1.msra.mxu0 0.0
    %1997 = vmatprep.subr.mxu0 0.0
    %1998 = vmatpush1.msra.mxu0 0.0
    %1999 = vmatprep.subr.mxu0 0.0
    %2000 = vmatpush1.msra.mxu0 0.0
    %2001 = vmatprep.subr.mxu0 0.0
    %2002 = vmatpush1.msra.mxu0 0.0
    %2003 = vmatprep.subr.mxu0 0.0
    %2004 = vmatpush1.msra.mxu0 0.0
    %2005 = vmatprep.subr.mxu0 0.0
    %2006 = vmatpush1.msra.mxu0 0.0
    %2007 = vmatprep.subr.mxu0 0.0
    %2008 = vmatpush1.msra.mxu0 0.0
    %2009 = vmatprep.subr.mxu0 0.0
    %2010 = vmatpush1.msra.mxu0 0.0
    %2011 = vmatprep.subr.mxu0 0.0
    %2012 = vmatpush1.msra.mxu0 0.0
    %2013 = vmatprep.subr.mxu0 0.0
    %2014 = vmatpush1.msra.mxu0 0.0
    %2015 = vmatprep.subr.mxu0 0.0
    %2016 = vmatpush1.msra.mxu0 0.0
    %2017 = vmatprep.subr.mxu0 0.0
    %2018 = vmatpush1.msra.mxu0 0.0
    %2019 = vmatprep.subr.mxu0 0.0
    %2020 = vmatpush1.msra.mxu0 0.0
    %2021 = vmatprep.subr.mxu0 0.0
    %2022 = vmatpush1.msra.mxu0 0.0
    %2023 = vmatprep.subr.mxu0 0.0
    %2024 = vmatpush1.msra.mxu0 0.0
    %2025 = vmatprep.subr.mxu0 0.0
    %2026 = vmatpush1.msra.mxu0 0.0
    %2027 = vmatprep.subr.mxu0 0.0
    %2028 = vmatpush1.msra.mxu0 0.0
    %2029 = vmatprep.subr.mxu0 0.0
    %2030 = vmatpush1.msra.mxu0 0.0
    %2031 = vmatprep.subr.mxu0 0.0
    %2032 = vmatpush1.msra.mxu0 0.0
    %2033 = vmatprep.subr.mxu0 0.0
    %2034 = vmatpush1.msra.mxu0 0.0
    %2035 = vmatprep.subr.mxu0 0.0
    %2036 = vmatpush1.msra.mxu0 0.0
    %2037 = vmatprep.mubr.f32.mxu0 0.0
    %2038 = vmatmul.mubr.f32.gmra.mrb[0].mxu0 %v1656
    %v2039 = vpop.f32.mrb[0].mxu0
    %v2040 = vadd.f32 1e-05, %v2039
    %v2041 = vpop.f32.mrb[0].mxu0
    %2042 = vmatprep.mubr.f32.mxu0 0.0
    %2043 = vmatmul.mubr.f32.gmra.mrb[0].mxu0 %v1659
    %v2044 = vpop.f32.mrb[0].mxu0
    %v2045 = vadd.f32 1e-05, %v2044
    %v2046 = vpop.f32.mrb[0].mxu0
    %2047 = vdwg.mxu0
    %v2048 = vrsqrt.pop %v2040
    %v2049 = vrsqrt.pop %v2045
    %v2051 = vsel %vm408, %v2048, 0
    %v2054 = vsel %vm408, %v2049, 0
    %2056 = vmatprep.subr.mxu0 0.0
    %2057 = vmatpush1.msra.mxu0 %v416
    %2058 = vmatprep.subr.mxu0 0.0
    %2059 = vmatpush1.msra.mxu0 0.0
    %2060 = vmatprep.subr.mxu0 0.0
    %2061 = vmatpush1.msra.mxu0 0.0
    %2062 = vmatprep.subr.mxu0 0.0
    %2063 = vmatpush1.msra.mxu0 0.0
    %2064 = vmatprep.subr.mxu0 0.0
    %2065 = vmatpush1.msra.mxu0 0.0
    %2066 = vmatprep.subr.mxu0 0.0
    %2067 = vmatpush1.msra.mxu0 0.0
    %2068 = vmatprep.subr.mxu0 0.0
    %2069 = vmatpush1.msra.mxu0 0.0
    %2070 = vmatprep.subr.mxu0 0.0
    %2071 = vmatpush1.msra.mxu0 0.0
    %2072 = vmatprep.subr.mxu0 0.0
    %2073 = vmatpush1.msra.mxu0 0.0
    %2074 = vmatprep.subr.mxu0 0.0
    %2075 = vmatpush1.msra.mxu0 0.0
    %2076 = vmatprep.subr.mxu0 0.0
    %2077 = vmatpush1.msra.mxu0 0.0
    %2078 = vmatprep.subr.mxu0 0.0
    %2079 = vmatpush1.msra.mxu0 0.0
    %2080 = vmatprep.subr.mxu0 0.0
    %2081 = vmatpush1.msra.mxu0 0.0
    %2082 = vmatprep.subr.mxu0 0.0
    %2083 = vmatpush1.msra.mxu0 0.0
    %2084 = vmatprep.subr.mxu0 0.0
    %2085 = vmatpush1.msra.mxu0 0.0
    %2086 = vmatprep.subr.mxu0 0.0
    %2087 = vmatpush1.msra.mxu0 0.0
    %2088 = vmatprep.subr.mxu0 0.0
    %2089 = vmatpush1.msra.mxu0 0.0
    %2090 = vmatprep.subr.mxu0 0.0
    %2091 = vmatpush1.msra.mxu0 0.0
    %2092 = vmatprep.subr.mxu0 0.0
    %2093 = vmatpush1.msra.mxu0 0.0
    %2094 = vmatprep.subr.mxu0 0.0
    %2095 = vmatpush1.msra.mxu0 0.0
    %2096 = vmatprep.subr.mxu0 0.0
    %2097 = vmatpush1.msra.mxu0 0.0
    %2098 = vmatprep.subr.mxu0 0.0
    %2099 = vmatpush1.msra.mxu0 0.0
    %2100 = vmatprep.subr.mxu0 0.0
    %2101 = vmatpush1.msra.mxu0 0.0
    %2102 = vmatprep.subr.mxu0 0.0
    %2103 = vmatpush1.msra.mxu0 0.0
    %2104 = vmatprep.subr.mxu0 0.0
    %2105 = vmatpush1.msra.mxu0 0.0
    %2106 = vmatprep.subr.mxu0 0.0
    %2107 = vmatpush1.msra.mxu0 0.0
    %2108 = vmatprep.subr.mxu0 0.0
    %2109 = vmatpush1.msra.mxu0 0.0
    %2110 = vmatprep.subr.mxu0 0.0
    %2111 = vmatpush1.msra.mxu0 0.0
    %2112 = vmatprep.subr.mxu0 0.0
    %2113 = vmatpush1.msra.mxu0 0.0
    %2114 = vmatprep.subr.mxu0 0.0
    %2115 = vmatpush1.msra.mxu0 0.0
    %2116 = vmatprep.subr.mxu0 0.0
    %2117 = vmatpush1.msra.mxu0 0.0
    %2118 = vmatprep.subr.mxu0 0.0
    %2119 = vmatpush1.msra.mxu0 0.0
    %2120 = vmatprep.mubr.f32.mxu0 0.0
    %2121 = vmatmul.mubr.f32.gmra.mrb[0].mxu0 %v2051
    %v2122 = vpop.f32.mrb[0].mxu0
    %v2123 = vadd.f32 0.0, %v2122
    %v2124 = vpop.f32.mrb[0].mxu0
    %2125 = vmatprep.mubr.f32.mxu0 0.0
    %2126 = vmatmul.mubr.f32.gmra.mrb[0].mxu0 %v2054
    %v2127 = vpop.f32.mrb[0].mxu0
    %v2128 = vadd.f32 0.0, %v2127
    %v2129 = vpop.f32.mrb[0].mxu0
    %2130 = vdwg.mxu0
    %v2131 = vmul.f32 %v1817, %v2123
    %v2132 = vmul.f32 %v1818, %v2128
    %2134 = vset.pattern.permute.xlu0 0
    %2135 = vperm.xlu0 %2134, %v1493
    %v2136 = vpop.permute.xlu0 %2135
    %2139 = vset.pattern.permute.xlu0 0
    %2140 = vperm.xlu0 %2139, %v1494
    %v2141 = vpop.permute.xlu0 %2140
    %v2143 = vmul.f32 %v2131, %v2136
    %v2144 = vmul.f32 %v2132, %v2141
    %2146 = vset.pattern.permute.xlu0 0
    %2147 = vperm.xlu0 %2146, %v1495
    %v2148 = vpop.permute.xlu0 %2147
    %2151 = vset.pattern.permute.xlu0 0
    %2152 = vperm.xlu0 %2151, %v1496
    %v2153 = vpop.permute.xlu0 %2152
    %v2155 = vadd.f32 %v2143, %v2148
    %v2156 = vadd.f32 %v2144, %v2153
    %v2157 = vmin.f32 %v2155, 20.0
    %v2158 = vmin.f32 %v2156, 20.0
    %v2159 = vmul.f32 %v2157, 1.442695
    %v2160 = vpow.pop %v2159
    %v2161 = vmul.f32 %v2158, 1.442695
    %v2162 = vpow.pop %v2161
    %v2163 = vadd.f32 %v2160, 2.0
    %v2164 = vadd.f32 %v2162, 2.0
    %v2165 = vmul.f32 %v2160, %v2163
    %v2166 = vmul.f32 %v2162, %v2164
    %v2167 = vadd.f32 %v2165, 2.0
    %v2168 = vadd.f32 %v2166, 2.0
    %v2169 = vrcp.pop %v2167
    %v2170 = vmul.f32 %v2165, %v2169
    %v2171 = vrcp.pop %v2168
    %v2172 = vmul.f32 %v2166, %v2171
    %v2173 = vmul.f32 %v2155, %v2170
    %v2174 = vmul.f32 %v2156, %v2172
    %v2175 = vld [vmem:[%s0 + $0x8] sm:$0xf]
    %v2176 = vld [vmem:[%s14] sm:$0xff]
    %v2177 = vld [vmem:[%s14 + $0x8] sm:$0xff]
    %v2178 = vld [vmem:[%s15] sm:$0xff]
    %v2179 = vld [vmem:[%s15 + $0x8] sm:$0xff]
    %2181 = vset.pattern.permute.xlu0 0
    %2182 = vperm.xlu0 %2181, %v2178
    %v2183 = vpop.permute.xlu0 %2182
    %2186 = vset.pattern.permute.xlu0 0
    %2187 = vperm.xlu0 %2186, %v2179
    %v2188 = vpop.permute.xlu0 %2187
    %vm2190 = vcmask 31744
    %v2192 = vsel %vm2190, %v2176, 0
    %v2195 = vsel %vm2190, %v2177, 0
    %v2198 = vsel %vm80, %v2175, 0
    %2200 = vmatprep.subr.mxu0 0.0
    %2201 = vmatpush1.msra.mxu0 %v2198
    %2202 = vmatprep.subr.mxu0 0.0
    %2203 = vmatpush1.msra.mxu0 0.0
    %2204 = vmatprep.subr.mxu0 0.0
    %2205 = vmatpush1.msra.mxu0 0.0
    %2206 = vmatprep.subr.mxu0 0.0
    %2207 = vmatpush1.msra.mxu0 0.0
    %2208 = vmatprep.subr.mxu0 0.0
    %2209 = vmatpush1.msra.mxu0 0.0
    %2210 = vmatprep.subr.mxu0 0.0
    %2211 = vmatpush1.msra.mxu0 0.0
    %2212 = vmatprep.subr.mxu0 0.0
    %2213 = vmatpush1.msra.mxu0 0.0
    %2214 = vmatprep.subr.mxu0 0.0
    %2215 = vmatpush1.msra.mxu0 0.0
    %2216 = vmatprep.subr.mxu0 0.0
    %2217 = vmatpush1.msra.mxu0 0.0
    %2218 = vmatprep.subr.mxu0 0.0
    %2219 = vmatpush1.msra.mxu0 0.0
    %2220 = vmatprep.subr.mxu0 0.0
    %2221 = vmatpush1.msra.mxu0 0.0
    %2222 = vmatprep.subr.mxu0 0.0
    %2223 = vmatpush1.msra.mxu0 0.0
    %2224 = vmatprep.subr.mxu0 0.0
    %2225 = vmatpush1.msra.mxu0 0.0
    %2226 = vmatprep.subr.mxu0 0.0
    %2227 = vmatpush1.msra.mxu0 0.0
    %2228 = vmatprep.subr.mxu0 0.0
    %2229 = vmatpush1.msra.mxu0 0.0
    %2230 = vmatprep.subr.mxu0 0.0
    %2231 = vmatpush1.msra.mxu0 0.0
    %2232 = vmatprep.subr.mxu0 0.0
    %2233 = vmatpush1.msra.mxu0 0.0
    %2234 = vmatprep.subr.mxu0 0.0
    %2235 = vmatpush1.msra.mxu0 0.0
    %2236 = vmatprep.subr.mxu0 0.0
    %2237 = vmatpush1.msra.mxu0 0.0
    %2238 = vmatprep.subr.mxu0 0.0
    %2239 = vmatpush1.msra.mxu0 0.0
    %2240 = vmatprep.subr.mxu0 0.0
    %2241 = vmatpush1.msra.mxu0 0.0
    %2242 = vmatprep.subr.mxu0 0.0
    %2243 = vmatpush1.msra.mxu0 0.0
    %2244 = vmatprep.subr.mxu0 0.0
    %2245 = vmatpush1.msra.mxu0 0.0
    %2246 = vmatprep.subr.mxu0 0.0
    %2247 = vmatpush1.msra.mxu0 0.0
    %2248 = vmatprep.subr.mxu0 0.0
    %2249 = vmatpush1.msra.mxu0 0.0
    %2250 = vmatprep.subr.mxu0 0.0
    %2251 = vmatpush1.msra.mxu0 0.0
    %2252 = vmatprep.subr.mxu0 0.0
    %2253 = vmatpush1.msra.mxu0 0.0
    %2254 = vmatprep.subr.mxu0 0.0
    %2255 = vmatpush1.msra.mxu0 0.0
    %2256 = vmatprep.subr.mxu0 0.0
    %2257 = vmatpush1.msra.mxu0 0.0
    %2258 = vmatprep.subr.mxu0 0.0
    %2259 = vmatpush1.msra.mxu0 0.0
    %2260 = vmatprep.subr.mxu0 0.0
    %2261 = vmatpush1.msra.mxu0 0.0
    %2262 = vmatprep.subr.mxu0 0.0
    %2263 = vmatpush1.msra.mxu0 0.0
    %2264 = vmatprep.mubr.f32.mxu0 0.0
    %2265 = vmatmul.mubr.f32.gmra.mrb[0].mxu0 %v2192
    %v2266 = vpop.f32.mrb[0].mxu0
    %v2267 = vadd.f32 %v2183, %v2266
    %v2268 = vpop.f32.mrb[0].mxu0
    %2269 = vmatprep.mubr.f32.mxu0 0.0
    %2270 = vmatmul.mubr.f32.gmra.mrb[0].mxu0 %v2195
    %v2271 = vpop.f32.mrb[0].mxu0
    %v2272 = vadd.f32 %v2188, %v2271
    %v2273 = vpop.f32.mrb[0].mxu0
    %2274 = vdwg.mxu0
    %v2275 = vadd.f32 %v2173, %v2267
    %v2276 = vadd.f32 %v2174, %v2272
    %2277 = vst.msk [vmem:[#allocation3] sm:$0xff] %vm163, %v2275
    %2278 = vst.msk [vmem:[#allocation3 + $0x8] sm:$0xff] %vm163, %v2276
    // Predicated region
    $region66: #{tpu_custom_call.1} parent=1 // pred_check
      _
    $region67: #{tpu_custom_call.1} parent=1 // pred_check_branch
      %2280 = sbr.rel (0) target = $region69
    $region68: #{tpu_custom_call.1} parent=1 // pred_region
      %s2282 = ssub.s32 256, 256
      %2283 = vsyncadd [#allocation4], %s2282
      %s2284 = sshll.u32 [#allocation3], 4
      %s2285 = int_to_ptr.vmem [resolvable:$true] %s2284
      %2290 = dma.vmem_to_hbm [thread:$0]  %s2285, 256, %s16, [#allocation4], 128, 128, 8
    $region69: #{tpu_custom_call.1} parent=1 // pred_fallthru
      _
    // Predicated region
    $region70: #{tpu_custom_call.1} parent=1 // pred_check
      _
    $region71: #{tpu_custom_call.1} parent=1 // pred_check_branch
      %2292 = sbr.rel (0) target = $region73
    $region72: #{tpu_custom_call.1} parent=1 // pred_region
      %2293 = dma.done [#allocation4], 256
    $region73: #{tpu_custom_call.1} parent=1 // pred_fallthru
      _
    %2294 = vsyncpa [#allocation4], 1

</llo_original>
